<compile_context>
chip_gen: v5e
topology: v5e:2x2
jax: 0.10.0
libtpu: 0.0.40
codegen_flags: <defaults>
</compile_context>

<pallas_src>
import functools

import jax
import jax.numpy as jnp
from jax.experimental import pallas as pl
from jax.experimental.pallas import tpu as pltpu

LANE = 128   # lane width; hidden / label dims padded to multiples of this


def _round_up(x, m):
    return (x + m - 1) // m * m


def _choose_tk(Hp):
    # Target ~0.5-1.25 MiB bf16 w1 tiles so the K pipeline is not dominated by
    # the ~0.35 us/step grid overhead when hidden_dim is small.
    if Hp <= 128:
        return 2560        # (2560,128) bf16 = 640 KiB  -> 2 K steps over 5120
    if Hp <= 512:
        return 1024        # <= 1 MiB                    -> 5 K steps
    return 512             # >= 1 MiB                    -> 10 K steps


def _choose_tn(Lp0, Hp):
    # Keep w2 fully resident (single label tile, fully fused epilogue) only
    # while its double buffer stays small; otherwise tile the label dimension
    # so large-n_labels classifiers still fit v7x's 64 MiB VMEM.
    if Lp0 <= 4096 and 2 * Hp * Lp0 * 2 <= 8 * 1024 * 1024:
        return Lp0
    return 2048


def _choose_batch_tiling(B):
    """Return (TM, Bp) with Bp % TM == 0; prefer >= 2 batch tiles (megacore)."""
    Bp8 = _round_up(B, 8)
    if Bp8 <= 8:
        return 8, 8                      # cannot split below the 8-row quantum
    if Bp8 >= 512:
        tm = 256                          # 256 rows saturate the MXU on all gens
    else:
        tm = _round_up(Bp8, 16) // 2      # exactly two "parallel" tiles for v7x
    return tm, _round_up(Bp8, tm)


def classifier_kernel(x_ref, w1_ref, b1_ref, w2_ref, b2_ref, out_ref, acc_ref):
    # x_ref:  [TM, TK]  bf16        w1_ref: [TK, Hp] bf16
    # b1_ref: [1, Hp]   f32         w2_ref: [Hp, TN] bf16
    # b2_ref: [1, TN]   f32         out_ref:[TM, TN] f32
    # acc_ref:[TM, Hp]  f32 scratch (persists across the K grid axis)
    k = pl.program_id(2)

    @pl.when(k == 0)
    def _():
        # Fold the l1 bias into the accumulator init (saves an epilogue add).
        acc_ref[...] = jnp.broadcast_to(b1_ref[...], acc_ref.shape)

    # Partial product of l1: x_tile @ w1_tile, f32 accumulation on the MXU.
    acc_ref[...] += jnp.dot(x_ref[...], w1_ref[...],
                            preferred_element_type=jnp.float32)

    @pl.when(k == pl.num_programs(2) - 1)
    def _():
        # Epilogue: ReLU in f32, then the meta matmul for this label tile as a
        # full-width MXU pass; the hidden activations never leave VMEM.
        hidden = jnp.maximum(acc_ref[...], 0.0)                    # F.relu
        out_ref[...] = jnp.dot(hidden.astype(jnp.bfloat16), w2_ref[...],
                               preferred_element_type=jnp.float32) + b2_ref[...]


def prepare_params(w1, b1, w2, b2):
    """One-time weight prep (transpose / pad / cast hoisted off the hot path).

    w1: [H, F] (PyTorch l1.weight),   b1: [H]
    w2: [L, H] (PyTorch meta.weight), b2: [L]
    Returns padded, pre-transposed ([in, out]) bf16 weights + f32 biases and
    the static dims / tile sizes used by classifier_forward.
    """
    H, F = w1.shape
    L, _ = w2.shape
    Hp = _round_up(H, LANE)
    TK = _choose_tk(Hp)
    TN = _choose_tn(_round_up(L, LANE), Hp)
    Fp = _round_up(F, TK)      # 5000 -> multiple of TK (5120)
    Lp = _round_up(L, TN)      # labels -> multiple of the label tile

    w1_p = jnp.zeros((Fp, Hp), jnp.bfloat16).at[:F, :H].set(
        jnp.asarray(w1, jnp.float32).T.astype(jnp.bfloat16))
    b1_p = jnp.zeros((1, Hp), jnp.float32).at[0, :H].set(
        jnp.asarray(b1, jnp.float32))
    w2_p = jnp.zeros((Hp, Lp), jnp.bfloat16).at[:H, :L].set(
        jnp.asarray(w2, jnp.float32).T.astype(jnp.bfloat16))
    b2_p = jnp.zeros((1, Lp), jnp.float32).at[0, :L].set(
        jnp.asarray(b2, jnp.float32))
    return (w1_p, b1_p, w2_p, b2_p), (F, H, L, Fp, Hp, Lp, TK, TN)


@functools.partial(jax.jit, static_argnames=("dims",))
def classifier_forward(inputs, params, dims):
    """Pallas implementation of Classifier.forward (inference, clusters=None)."""
    w1_p, b1_p, w2_p, b2_p = params
    F, H, L, Fp, Hp, Lp, TK, TN = dims

    x = jnp.asarray(inputs, jnp.float32)          # inputs.to(torch.float32)
    B = x.shape[0]
    TM, Bp = _choose_batch_tiling(B)

    # Pad batch / features and cast the matmul input to bf16 (exact zeros in
    # the padding -> no-op math).  F=5000 is not a multiple of 128 so the
    # feature pad is unavoidable; under jit this pad + cast fuses into a
    # single pass over x instead of a standalone eager op.
    x_p = jnp.zeros((Bp, Fp), jnp.bfloat16).at[:B, :F].set(
        x.astype(jnp.bfloat16))

    # grid = (batch tiles, label tiles, K tiles) = (parallel, parallel, arbitrary)
    grid = (Bp // TM, Lp // TN, Fp // TK)

    # Explicit scoped-VMEM sizing: double buffers for x / w1 / w2 / out plus
    # the f32 accumulator and the biases (headroom x2, capped at v7x physical).
    vmem_bytes = (2 * TM * TK * 2 + 2 * TK * Hp * 2 + 2 * Hp * TN * 2
                  + 2 * TM * TN * 4 + TM * Hp * 4 + 2 * (Hp + TN) * 4)
    vmem_limit = int(min(64 << 20, max(2 * vmem_bytes, 32 << 20)))

    out = pl.pallas_call(
        classifier_kernel,
        out_shape=jax.ShapeDtypeStruct((Bp, Lp), jnp.float32),
        grid_spec=pltpu.PrefetchScalarGridSpec(
            num_scalar_prefetch=0,
            grid=grid,
            in_specs=[
                pl.BlockSpec((TM, TK), lambda m, j, k: (m, k)),   # x
                pl.BlockSpec((TK, Hp), lambda m, j, k: (k, 0)),   # w1 (streamed over K)
                pl.BlockSpec((1, Hp), lambda m, j, k: (0, 0)),    # b1
                pl.BlockSpec((Hp, TN), lambda m, j, k: (0, j)),   # w2 (tiled over labels)
                pl.BlockSpec((1, TN), lambda m, j, k: (0, j)),    # b2
            ],
            out_specs=pl.BlockSpec((TM, TN), lambda m, j, k: (m, j)),
            scratch_shapes=[pltpu.VMEM((TM, Hp), jnp.float32)],
        ),
        compiler_params=pltpu.CompilerParams(
            dimension_semantics=("parallel", "parallel", "arbitrary"),
            vmem_limit_bytes=vmem_limit),
    )(x_p, w1_p, b1_p, w2_p, b2_p)

    return out[:B, :L]


# TODO(synk): get_candidates() (sigmoid + topk + python/numpy cluster gather,
# ragged edge-padding) and the BCEWithLogitsLoss training branches are
# host-side / data-dependent control flow with no clean single-kernel Pallas
# equivalent; only the inference hot path (l1 -> relu -> meta) is implemented.


def _init_linear(key, out_dim, in_dim):
    # PyTorch nn.Linear default init: U(-1/sqrt(in), 1/sqrt(in)) for W and b.
    kw, kb = jax.random.split(key)
    bound = 1.0 / (in_dim ** 0.5)
    w = jax.random.uniform(kw, (out_dim, in_dim), jnp.float32, -bound, bound)
    b = jax.random.uniform(kb, (out_dim,), jnp.float32, -bound, bound)
    return w, b


if __name__ == "__main__":
    # Small but module-consistent shapes: input features fixed at 5000 by
    # nn.Linear(5000, hidden_dim); small hidden_dim / n_labels / batch.
    F, H, L = 5000, 32, 64

    key = jax.random.PRNGKey(0)
    k_x, k_l1, k_meta = jax.random.split(key, 3)

    w1, b1 = _init_linear(k_l1, H, F)      # self.l1   : Linear(5000, H)
    w2, b2 = _init_linear(k_meta, L, H)    # self.meta : Linear(H, n_labels)

    # One-time weight prep (transpose / pad / cast hoisted out of the call).
    params, dims = prepare_params(w1, b1, w2, b2)

    # Reference weights (bf16-matched to the kernel's quantization).
    w1t_bf = w1.T.astype(jnp.bfloat16)
    w2t_bf = w2.T.astype(jnp.bfloat16)

    for B in (2, 20):   # single-tile and multi-batch-tile paths
        x = jax.random.normal(jax.random.fold_in(k_x, B), (B, F), jnp.float32)

        out = classifier_forward(x, params, dims)
        out = jax.block_until_ready(out)
        assert out.shape == (B, L)

        # Reference 1: bf16-matched reference (same quantization of the matmul
        # inputs, f32 accumulation) — validates the kernel arithmetic tightly.
        hidden_ref = jnp.maximum(
            jnp.dot(x.astype(jnp.bfloat16), w1t_bf,
                    preferred_element_type=jnp.float32) + b1, 0.0)
        ref_bf16 = jnp.dot(hidden_ref.astype(jnp.bfloat16), w2t_bf,
                           preferred_element_type=jnp.float32) + b2
        assert jnp.allclose(out, ref_bf16, atol=2e-3, rtol=2e-2), \
            f"mismatch vs bf16-matched reference (B={B})"

        # Reference 2: pure f32 module semantics (loose tolerance for bf16).
        ref_f32 = jnp.maximum(x @ w1.T + b1, 0.0) @ w2.T + b2
        assert jnp.allclose(out, ref_f32, atol=5e-2, rtol=5e-2), \
            f"mismatch vs f32 reference (B={B})"

    print("KERNEL_OK")
</pallas_src>

<mosaic_0001>
module attributes {stable_mosaic.version = 11 : i64} {
  func.func @classifier_kernel(%arg0: i32, %arg1: i32, %arg2: i32, %arg3: memref<8x2560xbf16, #tpu.memory_space<vmem>>, %arg4: memref<2560x128xbf16, #tpu.memory_space<vmem>>, %arg5: memref<1x128xf32, #tpu.memory_space<vmem>>, %arg6: memref<128x128xbf16, #tpu.memory_space<vmem>>, %arg7: memref<1x128xf32, #tpu.memory_space<vmem>>, %arg8: memref<8x128xf32, #tpu.memory_space<vmem>>, %arg9: memref<8x128xf32, #tpu.memory_space<vmem>>) attributes {dimension_semantics = [#tpu.dimension_semantics<parallel>, #tpu.dimension_semantics<parallel>, #tpu.dimension_semantics<arbitrary>], iteration_bounds = array<i64: 1, 1, 2>, scalar_prefetch = 0 : i64, scratch_operands = 1 : i64, tpu.core_type = #tpu.core_type<tc>, window_params = [{transform_indices = @transform_0, window_bounds = array<i64: 8, 2560>}, {transform_indices = @transform_1, window_bounds = array<i64: 2560, 128>}, {pipeline_mode = #tpu.pipeline_mode<synchronous>, transform_indices = @transform_2, window_bounds = array<i64: 1, 128>}, {transform_indices = @transform_3, window_bounds = array<i64: 128, 128>}, {transform_indices = @transform_4, window_bounds = array<i64: 1, 128>}, {transform_indices = @transform_5, window_bounds = array<i64: 8, 128>}]} {
    %c0_i32 = arith.constant 0 : i32
    %0 = arith.cmpi eq, %arg2, %c0_i32 : i32
    %1 = arith.extui %0 : i1 to i32
    %c0_i32_0 = arith.constant 0 : i32
    %2 = arith.cmpi ne, %1, %c0_i32_0 : i32
    scf.if %2 {
      %c0_9 = arith.constant 0 : index
      %c0_10 = arith.constant 0 : index
      %12 = vector.load %arg5[%c0_9, %c0_10] : memref<1x128xf32, #tpu.memory_space<vmem>>, vector<1x128xf32>
      %13 = vector.shape_cast %12 : vector<1x128xf32> to vector<1x128xf32>
      %14 = vector.broadcast %13 : vector<1x128xf32> to vector<8x128xf32>
      %c0_11 = arith.constant 0 : index
      %c0_12 = arith.constant 0 : index
      %15 = vector.load %arg9[%c0_11, %c0_12] : memref<8x128xf32, #tpu.memory_space<vmem>>, vector<8x128xf32>
      tpu.vector_store %arg9[%c0_11, %c0_12], %14 {strides = array<i32>} : memref<8x128xf32, #tpu.memory_space<vmem>>, vector<8x128xf32>,
    } else {
    }
    %c0 = arith.constant 0 : index
    %c0_1 = arith.constant 0 : index
    %3 = vector.load %arg9[%c0, %c0_1] : memref<8x128xf32, #tpu.memory_space<vmem>>, vector<8x128xf32>
    %c0_2 = arith.constant 0 : index
    %c0_3 = arith.constant 0 : index
    %4 = vector.load %arg3[%c0_2, %c0_3] : memref<8x2560xbf16, #tpu.memory_space<vmem>>, vector<8x2560xbf16>
    %c0_4 = arith.constant 0 : index
    %c0_5 = arith.constant 0 : index
    %5 = vector.load %arg4[%c0_4, %c0_5] : memref<2560x128xbf16, #tpu.memory_space<vmem>>, vector<2560x128xbf16>
    %cst = arith.constant dense<0.000000e+00> : vector<8x128xf32>
    %6 = tpu.matmul %4, %5, %cst {dimension_numbers = #tpu.dot_dimension_numbers<[1], [0], [0], [1], [0, 0, 1, 1], [], []>} : vector<8x2560xbf16>, vector<2560x128xbf16>, vector<8x128xf32> -> vector<8x128xf32>
    %7 = arith.addf %3, %6 : vector<8x128xf32>
    %c0_6 = arith.constant 0 : index
    %c0_7 = arith.constant 0 : index
    %8 = vector.load %arg9[%c0_6, %c0_7] : memref<8x128xf32, #tpu.memory_space<vmem>>, vector<8x128xf32>
    tpu.vector_store %arg9[%c0_6, %c0_7], %7 {strides = array<i32>} : memref<8x128xf32, #tpu.memory_space<vmem>>, vector<8x128xf32>,
    %c1_i32 = arith.constant 1 : i32
    %9 = arith.cmpi eq, %arg2, %c1_i32 : i32
    %10 = arith.extui %9 : i1 to i32
    %c0_i32_8 = arith.constant 0 : i32
    %11 = arith.cmpi ne, %10, %c0_i32_8 : i32
    scf.if %11 {
      %c0_9 = arith.constant 0 : index
      %c0_10 = arith.constant 0 : index
      %12 = vector.load %arg9[%c0_9, %c0_10] : memref<8x128xf32, #tpu.memory_space<vmem>>, vector<8x128xf32>
      %cst_11 = arith.constant 0.000000e+00 : f32
      %13 = vector.broadcast %cst_11 : f32 to vector<8x128xf32>
      %14 = arith.maximumf %12, %13 : vector<8x128xf32>
      %15 = arith.truncf %14 : vector<8x128xf32> to vector<8x128xbf16>
      %c0_12 = arith.constant 0 : index
      %c0_13 = arith.constant 0 : index
      %16 = vector.load %arg6[%c0_12, %c0_13] : memref<128x128xbf16, #tpu.memory_space<vmem>>, vector<128x128xbf16>
      %cst_14 = arith.constant dense<0.000000e+00> : vector<8x128xf32>
      %17 = tpu.matmul %15, %16, %cst_14 {dimension_numbers = #tpu.dot_dimension_numbers<[1], [0], [0], [1], [0, 0, 1, 1], [], []>} : vector<8x128xbf16>, vector<128x128xbf16>, vector<8x128xf32> -> vector<8x128xf32>
      %c0_15 = arith.constant 0 : index
      %c0_16 = arith.constant 0 : index
      %18 = vector.load %arg7[%c0_15, %c0_16] : memref<1x128xf32, #tpu.memory_space<vmem>>, vector<1x128xf32>
      %19 = vector.broadcast %18 : vector<1x128xf32> to vector<8x128xf32>
      %20 = arith.addf %17, %19 : vector<8x128xf32>
      %c0_17 = arith.constant 0 : index
      %c0_18 = arith.constant 0 : index
      %21 = vector.load %arg8[%c0_17, %c0_18] : memref<8x128xf32, #tpu.memory_space<vmem>>, vector<8x128xf32>
      tpu.vector_store %arg8[%c0_17, %c0_18], %20 {strides = array<i32>} : memref<8x128xf32, #tpu.memory_space<vmem>>, vector<8x128xf32>,
    } else {
    }
    return
  }
  func.func @transform_0(%arg0: i32, %arg1: i32, %arg2: i32) -> (i32, i32) {
    %c0_i32 = arith.constant 0 : i32
    return %arg0, %arg2 : i32, i32
  }
  func.func @transform_1(%arg0: i32, %arg1: i32, %arg2: i32) -> (i32, i32) {
    %c0_i32 = arith.constant 0 : i32
    %c0_i32_0 = arith.constant 0 : i32
    return %arg2, %c0_i32 : i32, i32
  }
  func.func @transform_2(%arg0: i32, %arg1: i32, %arg2: i32) -> (i32, i32) {
    %c0_i32 = arith.constant 0 : i32
    %c0_i32_0 = arith.constant 0 : i32
    %c0_i32_1 = arith.constant 0 : i32
    return %c0_i32, %c0_i32_0 : i32, i32
  }
  func.func @transform_3(%arg0: i32, %arg1: i32, %arg2: i32) -> (i32, i32) {
    %c0_i32 = arith.constant 0 : i32
    %c0_i32_0 = arith.constant 0 : i32
    return %c0_i32, %arg1 : i32, i32
  }
  func.func @transform_4(%arg0: i32, %arg1: i32, %arg2: i32) -> (i32, i32) {
    %c0_i32 = arith.constant 0 : i32
    %c0_i32_0 = arith.constant 0 : i32
    return %c0_i32, %arg1 : i32, i32
  }
  func.func @transform_5(%arg0: i32, %arg1: i32, %arg2: i32) -> (i32, i32) {
    %c0_i32 = arith.constant 0 : i32
    return %arg0, %arg1 : i32, i32
  }
}

</mosaic_0001>

<llo_original>
// kernel: classifier_forward.1
$region0: #{classifier_forward.1}
  #allocation0 [shape = 'u32[]', space=smem, size = 0x4, offset = 0x4, fixed_abs, tag = 'smem constant byte address 0x4 - core index']
  #allocation1 [shape = 'u32[72,128]{1,0:T(1,128)}', space=vmem, size = 0x9000, scoped, tag = 'internal scratch']
  #allocation2 [shape = 'f32[8,128]{1,0:T(8,128)}', space=vmem, size = 0x1000, scoped, tag = 'scratch operand']
  %s0 = inlined_call_operand.vmem [shape: bf16[8,5120], index: 0, kind: input, shape index: {}]
  %s1 = inlined_call_operand.hbm [shape: bf16[5120,128], index: 1, kind: input, shape index: {}]
  %s2 = inlined_call_operand.hbm [shape: f32[1,128], index: 2, kind: input, shape index: {}]
  %s3 = inlined_call_operand.hbm [shape: bf16[128,128], index: 3, kind: input, shape index: {}]
  %s4 = inlined_call_operand.hbm [shape: f32[1,128], index: 4, kind: input, shape index: {}]
  %s5 = inlined_call_operand.vmem [shape: f32[8,128], index: 5, kind: output, shape index: {}]
  %s6 = sld [smem:[#allocation0]]
  $region77: #{classifier_forward.1} parent=0
    _
  %s8 = ssub.s32 1, %s6
  %s9 = scalar_select 0, %s8, %s6
  $region1: #{classifier_forward.1} parent=0
    #allocation3 [shape = 'u8[1310720]{0}', space=vmem, size = 0x140000, scoped, tag = 'input window, operand 1']
    #allocation4 [shape = 's32[2]{0}', space=sflag, size = 0x8, scoped, tag = 'scoped memory for classifier_forward.1']
    #allocation5 [shape = 'u8[512]{0}', space=vmem, size = 0x400, scoped, tag = 'input window, operand 2, single buffered']
    #allocation6 [shape = 's32[1]{0}', space=sflag, size = 0x4, scoped, tag = 'scoped memory for classifier_forward.1']
    #allocation7 [shape = 'u8[32768]{0}', space=vmem, size = 0x8000, scoped, tag = 'input window, operand 3, single buffered']
    #allocation8 [shape = 'u8[512]{0}', space=vmem, size = 0x400, scoped, tag = 'input window, operand 4, single buffered']
    #allocation9 [shape = 's32[1]{0}', space=sflag, size = 0x4, scoped, tag = 'scoped memory for classifier_forward.1']
    %10 = vsyncpa [#allocation4], 0
    %s11 = scalar_lea.sflag [#allocation4], 1
    %12 = vsyncpa %s11, 0
    %13 = vsyncpa [#allocation6], 0
    %14 = vsyncpa [#allocation9], 0
    loop: start=0, step=1, limit=4
    $region2: #{classifier_forward.1} parent=1 // loop_pre_header
      _
    $region3: #{classifier_forward.1} parent=1 // loop_header
      %s16 = sphi 0, %s20
      %p17 = scmp.ge.s32.totalorder %s16, 4
      %s23 = sphi 0, %s42
      %s24 = sphi 0, %s38
      %s25 = sphi 0, %s34
      %s26 = sphi 0, %s23
      %s27 = sphi 0, %s24
      %s28 = sphi 0, %s25
      %s29 = sphi 0, %s26
      %s30 = sphi 0, %s27
      %s31 = sphi 0, %s28
      %s47 = sphi 0, %s49
      %s50 = sphi 0, %s47
      %s51 = sphi 0, %s50
      %s67 = sphi 0, %s51
      %s73 = sphi 0, %s75
      %s76 = sphi 0, %s73
      %s77 = sphi 0, %s76
      %s93 = sphi 0, %s77
      %s97 = sphi 0, %s97
      %s99 = sphi 0, %s97
      %s100 = sphi 0, %s99
      %s114 = sphi 0, %s100
      %s120 = sphi 0, %s122
      %s123 = sphi 0, %s120
      %s124 = sphi 0, %s123
      %s140 = sphi 0, %s124
      %s146 = sphi 0, %s148
      %s149 = sphi 0, %s146
      %s150 = sphi 0, %s149
      %s166 = sphi 0, %s150
      %s174 = sphi 0, %s176
      %s177 = sphi 0, %s174
      %s178 = sphi 0, %s177
      %s194 = sphi 0, %s178
    $region4: #{classifier_forward.1} parent=1 // loop_header_branch
      %19 = sbr.rel (%p17) target = $region8
    $region5: #{classifier_forward.1} parent=1 // loop_body
      %s21 = ssub.s32 %s16, 1
      %s22 = ssub.s32 %s16, 2
      %s32 = sadd.s32 1, %s25
      %p33 = scmp.ge.s32.totalorder %s32, 2
      %s34 = scalar_select %p33, 0, %s32
      %s35 = sadd.s32 1, %s24
      %s36 = scalar_select %p33, %s35, %s24
      %p37 = scmp.ge.s32.totalorder %s36, 1
      %s38 = scalar_select %p37, 0, %s36
      %s39 = sadd.s32 1, %s23
      %s40 = scalar_select %p37, %s39, %s23
      %p41 = scmp.ge.s32.totalorder %s40, 1
      %s42 = scalar_select %p41, 0, %s40
      %s43 = ssub.s32 %s23, %s42
      %s44 = ssub.s32 %s25, %s34
      %s45 = sor.u32 %s43, %s44
      %p46 = scmp.eq.s32.totalorder %s45, 0
      %s48 = sadd.s32 %s47, 1
      %s49 = scalar_select %p46, %s47, %s48
      %p52 = pneg %p46
      %p53 = scmp.eq.s32.totalorder %s16, 1
      %p54 = por %p52, %p53
      %p55 = scmp.ne.s32.totalorder %s47, %s50
      %p56 = scmp.eq.s32.totalorder %s16, 0
      %p57 = por %p55, %p56
      %p58 = scmp.ne.s32.totalorder %s47, %s50
      %p59 = scmp.eq.s32.totalorder %s21, 1
      %p60 = por %p58, %p59
      %p61 = scmp.ne.s32.totalorder %s50, %s51
      %p62 = scmp.eq.s32.totalorder %s21, 0
      %p63 = por %p61, %p62
      %p64 = scmp.ne.s32.totalorder %s50, %s51
      %p65 = scmp.eq.s32.totalorder %s22, 1
      %p66 = por %p64, %p65
      %p68 = scmp.ne.s32.totalorder %s51, %s67
      %p69 = scmp.eq.s32.totalorder %s22, 0
      %p70 = por %p68, %p69
      %s71 = ssub.s32 %s25, %s34
      %p72 = scmp.eq.s32.totalorder %s71, 0
      %s74 = sadd.s32 %s73, 1
      %s75 = scalar_select %p72, %s73, %s74
      %p78 = pneg %p72
      %p79 = scmp.eq.s32.totalorder %s16, 1
      %p80 = por %p78, %p79
      %p81 = scmp.ne.s32.totalorder %s73, %s76
      %p82 = scmp.eq.s32.totalorder %s16, 0
      %p83 = por %p81, %p82
      %p84 = scmp.ne.s32.totalorder %s73, %s76
      %p85 = scmp.eq.s32.totalorder %s21, 1
      %p86 = por %p84, %p85
      %p87 = scmp.ne.s32.totalorder %s76, %s77
      %p88 = scmp.eq.s32.totalorder %s21, 0
      %p89 = por %p87, %p88
      %p90 = scmp.ne.s32.totalorder %s76, %s77
      %p91 = scmp.eq.s32.totalorder %s22, 1
      %p92 = por %p90, %p91
      %p94 = scmp.ne.s32.totalorder %s77, %s93
      %p95 = scmp.eq.s32.totalorder %s22, 0
      %p96 = por %p94, %p95
      %s98 = sadd.s32 %s97, 1
      %p101 = scmp.eq.s32.totalorder %s16, 1
      %p102 = scmp.ne.s32.totalorder %s97, %s99
      %p103 = scmp.eq.s32.totalorder %s16, 0
      %p104 = por %p102, %p103
      %p105 = scmp.ne.s32.totalorder %s97, %s99
      %p106 = scmp.eq.s32.totalorder %s21, 1
      %p107 = por %p105, %p106
      %p108 = scmp.ne.s32.totalorder %s99, %s100
      %p109 = scmp.eq.s32.totalorder %s21, 0
      %p110 = por %p108, %p109
      %p111 = scmp.ne.s32.totalorder %s99, %s100
      %p112 = scmp.eq.s32.totalorder %s22, 1
      %p113 = por %p111, %p112
      %p115 = scmp.ne.s32.totalorder %s100, %s114
      %p116 = scmp.eq.s32.totalorder %s22, 0
      %p117 = por %p115, %p116
      %s118 = ssub.s32 %s24, %s38
      %p119 = scmp.eq.s32.totalorder %s118, 0
      %s121 = sadd.s32 %s120, 1
      %s122 = scalar_select %p119, %s120, %s121
      %p125 = pneg %p119
      %p126 = scmp.eq.s32.totalorder %s16, 1
      %p127 = por %p125, %p126
      %p128 = scmp.ne.s32.totalorder %s120, %s123
      %p129 = scmp.eq.s32.totalorder %s16, 0
      %p130 = por %p128, %p129
      %p131 = scmp.ne.s32.totalorder %s120, %s123
      %p132 = scmp.eq.s32.totalorder %s21, 1
      %p133 = por %p131, %p132
      %p134 = scmp.ne.s32.totalorder %s123, %s124
      %p135 = scmp.eq.s32.totalorder %s21, 0
      %p136 = por %p134, %p135
      %p137 = scmp.ne.s32.totalorder %s123, %s124
      %p138 = scmp.eq.s32.totalorder %s22, 1
      %p139 = por %p137, %p138
      %p141 = scmp.ne.s32.totalorder %s124, %s140
      %p142 = scmp.eq.s32.totalorder %s22, 0
      %p143 = por %p141, %p142
      %s144 = ssub.s32 %s24, %s38
      %p145 = scmp.eq.s32.totalorder %s144, 0
      %s147 = sadd.s32 %s146, 1
      %s148 = scalar_select %p145, %s146, %s147
      %p151 = pneg %p145
      %p152 = scmp.eq.s32.totalorder %s16, 1
      %p153 = por %p151, %p152
      %p154 = scmp.ne.s32.totalorder %s146, %s149
      %p155 = scmp.eq.s32.totalorder %s16, 0
      %p156 = por %p154, %p155
      %p157 = scmp.ne.s32.totalorder %s146, %s149
      %p158 = scmp.eq.s32.totalorder %s21, 1
      %p159 = por %p157, %p158
      %p160 = scmp.ne.s32.totalorder %s149, %s150
      %p161 = scmp.eq.s32.totalorder %s21, 0
      %p162 = por %p160, %p161
      %p163 = scmp.ne.s32.totalorder %s149, %s150
      %p164 = scmp.eq.s32.totalorder %s22, 1
      %p165 = por %p163, %p164
      %p167 = scmp.ne.s32.totalorder %s150, %s166
      %p168 = scmp.eq.s32.totalorder %s22, 0
      %p169 = por %p167, %p168
      %s170 = ssub.s32 %s23, %s42
      %s171 = ssub.s32 %s24, %s38
      %s172 = sor.u32 %s170, %s171
      %p173 = scmp.eq.s32.totalorder %s172, 0
      %s175 = sadd.s32 %s174, 1
      %s176 = scalar_select %p173, %s174, %s175
      %p179 = pneg %p173
      %p180 = scmp.eq.s32.totalorder %s16, 1
      %p181 = por %p179, %p180
      %p182 = scmp.ne.s32.totalorder %s174, %s177
      %p183 = scmp.eq.s32.totalorder %s16, 0
      %p184 = por %p182, %p183
      %p185 = scmp.ne.s32.totalorder %s174, %s177
      %p186 = scmp.eq.s32.totalorder %s21, 1
      %p187 = por %p185, %p186
      %p188 = scmp.ne.s32.totalorder %s177, %s178
      %p189 = scmp.eq.s32.totalorder %s21, 0
      %p190 = por %p188, %p189
      %p191 = scmp.ne.s32.totalorder %s177, %s178
      %p192 = scmp.eq.s32.totalorder %s22, 1
      %p193 = por %p191, %p192
      %p195 = scmp.ne.s32.totalorder %s178, %s194
      %p196 = scmp.eq.s32.totalorder %s22, 0
      %p197 = por %p195, %p196
      %p198 = scmp.le.s32.totalorder 1, %s16
      %p199 = scmp.lt.s32.totalorder %s16, 3
      %p200 = pnand %p198, %p199
      %p201 = pneg %p200
      // Predicated region
      $region9: #{classifier_forward.1} parent=5 // pred_check
        _
      $region10: #{classifier_forward.1} parent=5 // pred_check_branch
        %203 = sbr.rel (%p200) target = $region12
      $region11: #{classifier_forward.1} parent=5 // pred_region
        %s204 = ssub.s32 %s16, 1
        // Predicated region
        $region13: #{classifier_forward.1} parent=11 // pred_check
          %p205 = pneg %p110
        $region14: #{classifier_forward.1} parent=11 // pred_check_branch
          %207 = sbr.rel (%p205) target = $region16
        $region15: #{classifier_forward.1} parent=11 // pred_region
          %209 = vsyncadd [#allocation6], 0
          %s211 = sshll.u32 %s2, 4
          %s212 = int_to_ptr.hbm [resolvable:$true] %s211
          %s213 = sshll.u32 [#allocation5], 4
          %s214 = int_to_ptr.vmem [resolvable:$true] %s213
          %216 = dma.hbm_to_vmem [thread:$0]  %s212, 16, %s214, [#allocation6]
        $region16: #{classifier_forward.1} parent=11 // pred_fallthru
          _
        // Predicated region
        $region17: #{classifier_forward.1} parent=11 // pred_check
          %p217 = pneg %p136
        $region18: #{classifier_forward.1} parent=11 // pred_check_branch
          %219 = sbr.rel (%p217) target = $region20
        $region19: #{classifier_forward.1} parent=11 // pred_region
          %221 = vsyncadd [#allocation6], 0
          %s222 = smul.addr %s27, 4
          %s223 = scalar_lea.hbm %s3, %s222
          %s224 = sshll.u32 %s223, 4
          %s225 = int_to_ptr.hbm [resolvable:$true] %s224
          %s226 = sshll.u32 [#allocation7], 4
          %s227 = int_to_ptr.vmem [resolvable:$true] %s226
          %232 = dma.hbm_to_vmem [thread:$0]  %s225, 1024, %s227, [#allocation6], 64, 64, 4
        $region20: #{classifier_forward.1} parent=11 // pred_fallthru
          _
        // Predicated region
        $region21: #{classifier_forward.1} parent=11 // pred_check
          %p233 = pneg %p162
        $region22: #{classifier_forward.1} parent=11 // pred_check_branch
          %235 = sbr.rel (%p233) target = $region24
        $region23: #{classifier_forward.1} parent=11 // pred_region
          %237 = vsyncadd [#allocation9], 0
          %s238 = scalar_lea.hbm %s4, %s27
          %s240 = sshll.u32 %s238, 4
          %s241 = int_to_ptr.hbm [resolvable:$true] %s240
          %s242 = sshll.u32 [#allocation8], 4
          %s243 = int_to_ptr.vmem [resolvable:$true] %s242
          %245 = dma.hbm_to_vmem [thread:$0]  %s241, 16, %s243, [#allocation9]
        $region24: #{classifier_forward.1} parent=11 // pred_fallthru
          _
      $region12: #{classifier_forward.1} parent=5 // pred_fallthru
        _
      %p246 = scmp.lt.s32.totalorder %s16, 2
      // Predicated region
      $region25: #{classifier_forward.1} parent=5 // pred_check
        %p247 = pneg %p246
      $region26: #{classifier_forward.1} parent=5 // pred_check_branch
        %249 = sbr.rel (%p247) target = $region28
      $region27: #{classifier_forward.1} parent=5 // pred_region
        // Predicated region
        $region29: #{classifier_forward.1} parent=27 // pred_check
          %p250 = pneg %p57
        $region30: #{classifier_forward.1} parent=27 // pred_check_branch
          %252 = sbr.rel (%p250) target = $region32
        $region31: #{classifier_forward.1} parent=27 // pred_region
          %s253 = smul.u32 20, %s25
          %p254 = scmp.lt.s32.totalorder %s23, 0
          %s255 = scalar_select %p254, %s23, 0
          %p256 = scmp.lt.s32.totalorder %s253, 39
          %s257 = scalar_select %p256, %s253, 39
          %s258 = smul.addr %s255, 40
          %s259 = sadd.s32 %s257, %s258
          %s260 = smul.addr %s259, 4
          %s261 = scalar_lea.vmem %s0, %s260
          %s262 = smul.u32 20, %s25
        $region32: #{classifier_forward.1} parent=27 // pred_fallthru
          _
        // Predicated region
        $region33: #{classifier_forward.1} parent=27 // pred_check
          %p263 = pneg %p83
        $region34: #{classifier_forward.1} parent=27 // pred_check_branch
          %265 = sbr.rel (%p263) target = $region36
        $region35: #{classifier_forward.1} parent=27 // pred_region
          %s266 = sand.u32 %s73, 1
          %s267 = scalar_lea.sflag [#allocation4], %s266
          %s268 = sand.u32 %s73, 1
          %s269 = smul.addr %s268, 1280
          %s270 = scalar_lea.vmem [#allocation3], %s269
          %s271 = smul.u32 320, %s25
          %273 = vsyncadd %s267, 0
          %s274 = smul.addr %s271, 4
          %s275 = scalar_lea.hbm %s1, %s274
          %s276 = sshll.u32 %s275, 4
          %s277 = int_to_ptr.hbm [resolvable:$true] %s276
          %s278 = sshll.u32 %s270, 4
          %s279 = int_to_ptr.vmem [resolvable:$true] %s278
          %284 = dma.hbm_to_vmem [thread:$0]  %s277, 20480, %s279, %s267, 64, 64, 4
        $region36: #{classifier_forward.1} parent=27 // pred_fallthru
          _
      $region28: #{classifier_forward.1} parent=5 // pred_fallthru
        _
      %p285 = scmp.le.s32.totalorder 1, %s16
      %p286 = scmp.lt.s32.totalorder %s16, 3
      %p287 = pnand %p285, %p286
      %p288 = pneg %p287
      // Predicated region
      $region37: #{classifier_forward.1} parent=5 // pred_check
        _
      $region38: #{classifier_forward.1} parent=5 // pred_check_branch
        %290 = sbr.rel (%p287) target = $region40
      $region39: #{classifier_forward.1} parent=5 // pred_region
        %s291 = ssub.s32 %s16, 1
        %s292 = sand.u32 %s76, 1
        %s293 = scalar_lea.sflag [#allocation4], %s292
        %s294 = sand.u32 %s76, 1
        %s295 = smul.addr %s294, 1280
        %s296 = scalar_lea.vmem [#allocation3], %s295
        // Predicated region
        $region41: #{classifier_forward.1} parent=39 // pred_check
          %p297 = pneg %p89
        $region42: #{classifier_forward.1} parent=39 // pred_check_branch
          %299 = sbr.rel (%p297) target = $region44
        $region43: #{classifier_forward.1} parent=39 // pred_region
          %301 = dma.done %s293, 20480
        $region44: #{classifier_forward.1} parent=39 // pred_fallthru
          _
        // Predicated region
        $region45: #{classifier_forward.1} parent=39 // pred_check
          %p302 = pneg %p110
        $region46: #{classifier_forward.1} parent=39 // pred_check_branch
          %304 = sbr.rel (%p302) target = $region48
        $region47: #{classifier_forward.1} parent=39 // pred_region
          %306 = dma.done [#allocation6], 16
        $region48: #{classifier_forward.1} parent=39 // pred_fallthru
          _
        // Predicated region
        $region49: #{classifier_forward.1} parent=39 // pred_check
          %p307 = pneg %p136
        $region50: #{classifier_forward.1} parent=39 // pred_check_branch
          %309 = sbr.rel (%p307) target = $region52
        $region51: #{classifier_forward.1} parent=39 // pred_region
          %311 = dma.done [#allocation6], 1024
        $region52: #{classifier_forward.1} parent=39 // pred_fallthru
          _
        // Predicated region
        $region53: #{classifier_forward.1} parent=39 // pred_check
          %p312 = pneg %p162
        $region54: #{classifier_forward.1} parent=39 // pred_check_branch
          %314 = sbr.rel (%p312) target = $region56
        $region55: #{classifier_forward.1} parent=39 // pred_region
          %316 = dma.done [#allocation9], 16
        $region56: #{classifier_forward.1} parent=39 // pred_fallthru
          _
        %s317 = smul.u32 20, %s28
        %p318 = scmp.lt.s32.totalorder %s26, 0
        %s319 = scalar_select %p318, %s26, 0
        %p320 = scmp.lt.s32.totalorder %s317, 39
        %s321 = scalar_select %p320, %s317, 39
        %s322 = smul.addr %s319, 40
        %s323 = sadd.s32 %s321, %s322
        %s324 = smul.addr %s323, 4
        %s325 = scalar_lea.vmem %s0, %s324
        %p326 = pneg %p63
        %p327 = pneg %p60
        %s328 = sand.u32 %s76, 1
        %s329 = scalar_lea.sflag [#allocation4], %s328
        %s330 = sand.u32 %s76, 1
        %s331 = smul.addr %s330, 1280
        %s332 = scalar_lea.vmem [#allocation3], %s331
        %p333 = pneg %p89
        %p334 = pneg %p86
        %p335 = pneg %p110
        %p336 = pneg %p107
        %p337 = pneg %p136
        %p338 = pneg %p133
        %p339 = pneg %p162
        %p340 = pneg %p159
        %p341 = pneg %p190
        %p342 = pneg %p187
        %p343 = scmp.lt.s32.totalorder %s26, 0
        %s344 = scalar_select %p343, %s26, 0
        %p345 = scmp.lt.s32.totalorder %s27, 0
        %s346 = scalar_select %p345, %s27, 0
        %s347 = sadd.s32 %s346, %s344
        %s348 = smul.addr %s347, 8
        %s349 = scalar_lea.vmem %s5, %s348
        %s350 = smul.u32 20, %s28
        %p351 = scmp.lt.s32.totalorder %s26, 0
        %s352 = scalar_select %p351, %s26, 0
        %p353 = scmp.lt.s32.totalorder %s350, 39
        %s354 = scalar_select %p353, %s350, 39
        %s355 = smul.addr %s352, 40
        %s356 = sadd.s32 %s354, %s355
        %s357 = smul.addr %s356, 4
        %s358 = scalar_lea.vmem %s0, %s357
        %s359 = smul.u32 20, %s28
        %s360 = smul.u32 320, %s28
        %p361 = scmp.lt.s32.totalorder %s26, 0
        %s362 = scalar_select %p361, %s26, 0
        %p363 = scmp.lt.s32.totalorder %s27, 0
        %s364 = scalar_select %p363, %s27, 0
        %s365 = sadd.s32 %s364, %s362
        %s366 = smul.addr %s365, 8
        %s367 = scalar_lea.vmem %s5, %s366
        %p368 = scmp.eq.s32.totalorder %s28, 0
        // Predicated region
        $region57: #{classifier_forward.1} parent=39 // pred_check
          %p369 = pneg %p368
        $region58: #{classifier_forward.1} parent=39 // pred_check_branch
          %371 = sbr.rel (%p369) target = $region60
        $region59: #{classifier_forward.1} parent=39 // pred_region
          %v372 = vld [vmem:[#allocation5] sm:$0x1]
          %v374 = vperm.slane %v372, 0
          %376 = vst [vmem:[#allocation2] sm:$0xff] %v374
        $region60: #{classifier_forward.1} parent=39 // pred_fallthru
          _
        %v377 = vld [vmem:[#allocation2] sm:$0xff]
        %v378 = vld [vmem:[%s358] sm:$0xff]
        %v379 = vld [vmem:[%s358 + $0x8] sm:$0xff]
        %v380 = vld [vmem:[%s358 + $0x10] sm:$0xff]
        %v381 = vld [vmem:[%s358 + $0x18] sm:$0xff]
        %v382 = vld [vmem:[%s358 + $0x20] sm:$0xff]
        %v383 = vld [vmem:[%s358 + $0x28] sm:$0xff]
        %v384 = vld [vmem:[%s358 + $0x30] sm:$0xff]
        %v385 = vld [vmem:[%s358 + $0x38] sm:$0xff]
        %v386 = vld [vmem:[%s358 + $0x40] sm:$0xff]
        %v387 = vld [vmem:[%s358 + $0x48] sm:$0xff]
        %v388 = vld [vmem:[%s296] sm:$0xf]
        %v389 = vld [vmem:[%s296 + $0x4] sm:$0xf]
        %v390 = vld [vmem:[%s296 + $0x8] sm:$0xf]
        %v391 = vld [vmem:[%s296 + $0xc] sm:$0xf]
        %v392 = vld [vmem:[%s296 + $0x10] sm:$0xf]
        %v393 = vld [vmem:[%s296 + $0x14] sm:$0xf]
        %v394 = vld [vmem:[%s296 + $0x18] sm:$0xf]
        %v395 = vld [vmem:[%s296 + $0x1c] sm:$0xf]
        %v396 = vld [vmem:[%s296 + $0x20] sm:$0xf]
        %v397 = vld [vmem:[%s296 + $0x24] sm:$0xf]
        %v398 = vld [vmem:[%s296 + $0x28] sm:$0xf]
        %v399 = vld [vmem:[%s296 + $0x2c] sm:$0xf]
        %v400 = vld [vmem:[%s296 + $0x30] sm:$0xf]
        %v401 = vld [vmem:[%s296 + $0x34] sm:$0xf]
        %v402 = vld [vmem:[%s296 + $0x38] sm:$0xf]
        %v403 = vld [vmem:[%s296 + $0x3c] sm:$0xf]
        %v404 = vld [vmem:[%s296 + $0x40] sm:$0xf]
        %v405 = vld [vmem:[%s296 + $0x44] sm:$0xf]
        %v406 = vld [vmem:[%s296 + $0x48] sm:$0xf]
        %v407 = vld [vmem:[%s296 + $0x4c] sm:$0xf]
        %v408 = vld [vmem:[%s296 + $0x50] sm:$0xf]
        %v409 = vld [vmem:[%s296 + $0x54] sm:$0xf]
        %v410 = vld [vmem:[%s296 + $0x58] sm:$0xf]
        %v411 = vld [vmem:[%s296 + $0x5c] sm:$0xf]
        %v412 = vld [vmem:[%s296 + $0x60] sm:$0xf]
        %v413 = vld [vmem:[%s296 + $0x64] sm:$0xf]
        %v414 = vld [vmem:[%s296 + $0x68] sm:$0xf]
        %v415 = vld [vmem:[%s296 + $0x6c] sm:$0xf]
        %v416 = vld [vmem:[%s296 + $0x70] sm:$0xf]
        %v417 = vld [vmem:[%s296 + $0x74] sm:$0xf]
        %v418 = vld [vmem:[%s296 + $0x78] sm:$0xf]
        %v419 = vld [vmem:[%s296 + $0x7c] sm:$0xf]
        %v420 = vld [vmem:[%s296 + $0x80] sm:$0xf]
        %v421 = vld [vmem:[%s296 + $0x84] sm:$0xf]
        %v422 = vld [vmem:[%s296 + $0x88] sm:$0xf]
        %v423 = vld [vmem:[%s296 + $0x8c] sm:$0xf]
        %v424 = vld [vmem:[%s296 + $0x90] sm:$0xf]
        %v425 = vld [vmem:[%s296 + $0x94] sm:$0xf]
        %v426 = vld [vmem:[%s296 + $0x98] sm:$0xf]
        %v427 = vld [vmem:[%s296 + $0x9c] sm:$0xf]
        %v428 = vld [vmem:[%s296 + $0xa0] sm:$0xf]
        %v429 = vld [vmem:[%s296 + $0xa4] sm:$0xf]
        %v430 = vld [vmem:[%s296 + $0xa8] sm:$0xf]
        %v431 = vld [vmem:[%s296 + $0xac] sm:$0xf]
        %v432 = vld [vmem:[%s296 + $0xb0] sm:$0xf]
        %v433 = vld [vmem:[%s296 + $0xb4] sm:$0xf]
        %v434 = vld [vmem:[%s296 + $0xb8] sm:$0xf]
        %v435 = vld [vmem:[%s296 + $0xbc] sm:$0xf]
        %v436 = vld [vmem:[%s296 + $0xc0] sm:$0xf]
        %v437 = vld [vmem:[%s296 + $0xc4] sm:$0xf]
        %v438 = vld [vmem:[%s296 + $0xc8] sm:$0xf]
        %v439 = vld [vmem:[%s296 + $0xcc] sm:$0xf]
        %v440 = vld [vmem:[%s296 + $0xd0] sm:$0xf]
        %v441 = vld [vmem:[%s296 + $0xd4] sm:$0xf]
        %v442 = vld [vmem:[%s296 + $0xd8] sm:$0xf]
        %v443 = vld [vmem:[%s296 + $0xdc] sm:$0xf]
        %v444 = vld [vmem:[%s296 + $0xe0] sm:$0xf]
        %v445 = vld [vmem:[%s296 + $0xe4] sm:$0xf]
        %v446 = vld [vmem:[%s296 + $0xe8] sm:$0xf]
        %v447 = vld [vmem:[%s296 + $0xec] sm:$0xf]
        %v448 = vld [vmem:[%s296 + $0xf0] sm:$0xf]
        %v449 = vld [vmem:[%s296 + $0xf4] sm:$0xf]
        %v450 = vld [vmem:[%s296 + $0xf8] sm:$0xf]
        %v451 = vld [vmem:[%s296 + $0xfc] sm:$0xf]
        %v452 = vld [vmem:[%s296 + $0x100] sm:$0xf]
        %v453 = vld [vmem:[%s296 + $0x104] sm:$0xf]
        %v454 = vld [vmem:[%s296 + $0x108] sm:$0xf]
        %v455 = vld [vmem:[%s296 + $0x10c] sm:$0xf]
        %v456 = vld [vmem:[%s296 + $0x110] sm:$0xf]
        %v457 = vld [vmem:[%s296 + $0x114] sm:$0xf]
        %v458 = vld [vmem:[%s296 + $0x118] sm:$0xf]
        %v459 = vld [vmem:[%s296 + $0x11c] sm:$0xf]
        %v460 = vld [vmem:[%s296 + $0x120] sm:$0xf]
        %v461 = vld [vmem:[%s296 + $0x124] sm:$0xf]
        %v462 = vld [vmem:[%s296 + $0x128] sm:$0xf]
        %v463 = vld [vmem:[%s296 + $0x12c] sm:$0xf]
        %v464 = vld [vmem:[%s296 + $0x130] sm:$0xf]
        %v465 = vld [vmem:[%s296 + $0x134] sm:$0xf]
        %v466 = vld [vmem:[%s296 + $0x138] sm:$0xf]
        %v467 = vld [vmem:[%s296 + $0x13c] sm:$0xf]
        %v468 = vld [vmem:[%s296 + $0x140] sm:$0xf]
        %v469 = vld [vmem:[%s296 + $0x144] sm:$0xf]
        %v470 = vld [vmem:[%s296 + $0x148] sm:$0xf]
        %v471 = vld [vmem:[%s296 + $0x14c] sm:$0xf]
        %v472 = vld [vmem:[%s296 + $0x150] sm:$0xf]
        %v473 = vld [vmem:[%s296 + $0x154] sm:$0xf]
        %v474 = vld [vmem:[%s296 + $0x158] sm:$0xf]
        %v475 = vld [vmem:[%s296 + $0x15c] sm:$0xf]
        %v476 = vld [vmem:[%s296 + $0x160] sm:$0xf]
        %v477 = vld [vmem:[%s296 + $0x164] sm:$0xf]
        %v478 = vld [vmem:[%s296 + $0x168] sm:$0xf]
        %v479 = vld [vmem:[%s296 + $0x16c] sm:$0xf]
        %v480 = vld [vmem:[%s296 + $0x170] sm:$0xf]
        %v481 = vld [vmem:[%s296 + $0x174] sm:$0xf]
        %v482 = vld [vmem:[%s296 + $0x178] sm:$0xf]
        %v483 = vld [vmem:[%s296 + $0x17c] sm:$0xf]
        %v484 = vld [vmem:[%s296 + $0x180] sm:$0xf]
        %v485 = vld [vmem:[%s296 + $0x184] sm:$0xf]
        %v486 = vld [vmem:[%s296 + $0x188] sm:$0xf]
        %v487 = vld [vmem:[%s296 + $0x18c] sm:$0xf]
        %v488 = vld [vmem:[%s296 + $0x190] sm:$0xf]
        %v489 = vld [vmem:[%s296 + $0x194] sm:$0xf]
        %v490 = vld [vmem:[%s296 + $0x198] sm:$0xf]
        %v491 = vld [vmem:[%s296 + $0x19c] sm:$0xf]
        %v492 = vld [vmem:[%s296 + $0x1a0] sm:$0xf]
        %v493 = vld [vmem:[%s296 + $0x1a4] sm:$0xf]
        %v494 = vld [vmem:[%s296 + $0x1a8] sm:$0xf]
        %v495 = vld [vmem:[%s296 + $0x1ac] sm:$0xf]
        %v496 = vld [vmem:[%s296 + $0x1b0] sm:$0xf]
        %v497 = vld [vmem:[%s296 + $0x1b4] sm:$0xf]
        %v498 = vld [vmem:[%s296 + $0x1b8] sm:$0xf]
        %v499 = vld [vmem:[%s296 + $0x1bc] sm:$0xf]
        %v500 = vld [vmem:[%s296 + $0x1c0] sm:$0xf]
        %v501 = vld [vmem:[%s296 + $0x1c4] sm:$0xf]
        %v502 = vld [vmem:[%s296 + $0x1c8] sm:$0xf]
        %v503 = vld [vmem:[%s296 + $0x1cc] sm:$0xf]
        %v504 = vld [vmem:[%s296 + $0x1d0] sm:$0xf]
        %v505 = vld [vmem:[%s296 + $0x1d4] sm:$0xf]
        %v506 = vld [vmem:[%s296 + $0x1d8] sm:$0xf]
        %v507 = vld [vmem:[%s296 + $0x1dc] sm:$0xf]
        %v508 = vld [vmem:[%s296 + $0x1e0] sm:$0xf]
        %v509 = vld [vmem:[%s296 + $0x1e4] sm:$0xf]
        %v510 = vld [vmem:[%s296 + $0x1e8] sm:$0xf]
        %v511 = vld [vmem:[%s296 + $0x1ec] sm:$0xf]
        %v512 = vld [vmem:[%s296 + $0x1f0] sm:$0xf]
        %v513 = vld [vmem:[%s296 + $0x1f4] sm:$0xf]
        %v514 = vld [vmem:[%s296 + $0x1f8] sm:$0xf]
        %v515 = vld [vmem:[%s296 + $0x1fc] sm:$0xf]
        %v516 = vld [vmem:[%s296 + $0x200] sm:$0xf]
        %v517 = vld [vmem:[%s296 + $0x204] sm:$0xf]
        %v518 = vld [vmem:[%s296 + $0x208] sm:$0xf]
        %v519 = vld [vmem:[%s296 + $0x20c] sm:$0xf]
        %v520 = vld [vmem:[%s296 + $0x210] sm:$0xf]
        %v521 = vld [vmem:[%s296 + $0x214] sm:$0xf]
        %v522 = vld [vmem:[%s296 + $0x218] sm:$0xf]
        %v523 = vld [vmem:[%s296 + $0x21c] sm:$0xf]
        %v524 = vld [vmem:[%s296 + $0x220] sm:$0xf]
        %v525 = vld [vmem:[%s296 + $0x224] sm:$0xf]
        %v526 = vld [vmem:[%s296 + $0x228] sm:$0xf]
        %v527 = vld [vmem:[%s296 + $0x22c] sm:$0xf]
        %v528 = vld [vmem:[%s296 + $0x230] sm:$0xf]
        %v529 = vld [vmem:[%s296 + $0x234] sm:$0xf]
        %v530 = vld [vmem:[%s296 + $0x238] sm:$0xf]
        %v531 = vld [vmem:[%s296 + $0x23c] sm:$0xf]
        %v532 = vld [vmem:[%s296 + $0x240] sm:$0xf]
        %v533 = vld [vmem:[%s296 + $0x244] sm:$0xf]
        %v534 = vld [vmem:[%s296 + $0x248] sm:$0xf]
        %v535 = vld [vmem:[%s296 + $0x24c] sm:$0xf]
        %v536 = vld [vmem:[%s296 + $0x250] sm:$0xf]
        %v537 = vld [vmem:[%s296 + $0x254] sm:$0xf]
        %v538 = vld [vmem:[%s296 + $0x258] sm:$0xf]
        %v539 = vld [vmem:[%s296 + $0x25c] sm:$0xf]
        %v540 = vld [vmem:[%s296 + $0x260] sm:$0xf]
        %v541 = vld [vmem:[%s296 + $0x264] sm:$0xf]
        %v542 = vld [vmem:[%s296 + $0x268] sm:$0xf]
        %v543 = vld [vmem:[%s296 + $0x26c] sm:$0xf]
        %v544 = vld [vmem:[%s296 + $0x270] sm:$0xf]
        %v545 = vld [vmem:[%s296 + $0x274] sm:$0xf]
        %v546 = vld [vmem:[%s296 + $0x278] sm:$0xf]
        %v547 = vld [vmem:[%s296 + $0x27c] sm:$0xf]
        %v548 = vld [vmem:[%s296 + $0x280] sm:$0xf]
        %v549 = vld [vmem:[%s296 + $0x284] sm:$0xf]
        %v550 = vld [vmem:[%s296 + $0x288] sm:$0xf]
        %v551 = vld [vmem:[%s296 + $0x28c] sm:$0xf]
        %v552 = vld [vmem:[%s296 + $0x290] sm:$0xf]
        %v553 = vld [vmem:[%s296 + $0x294] sm:$0xf]
        %v554 = vld [vmem:[%s296 + $0x298] sm:$0xf]
        %v555 = vld [vmem:[%s296 + $0x29c] sm:$0xf]
        %v556 = vld [vmem:[%s296 + $0x2a0] sm:$0xf]
        %v557 = vld [vmem:[%s296 + $0x2a4] sm:$0xf]
        %v558 = vld [vmem:[%s296 + $0x2a8] sm:$0xf]
        %v559 = vld [vmem:[%s296 + $0x2ac] sm:$0xf]
        %v560 = vld [vmem:[%s296 + $0x2b0] sm:$0xf]
        %v561 = vld [vmem:[%s296 + $0x2b4] sm:$0xf]
        %v562 = vld [vmem:[%s296 + $0x2b8] sm:$0xf]
        %v563 = vld [vmem:[%s296 + $0x2bc] sm:$0xf]
        %v564 = vld [vmem:[%s296 + $0x2c0] sm:$0xf]
        %v565 = vld [vmem:[%s296 + $0x2c4] sm:$0xf]
        %v566 = vld [vmem:[%s296 + $0x2c8] sm:$0xf]
        %v567 = vld [vmem:[%s296 + $0x2cc] sm:$0xf]
        %v568 = vld [vmem:[%s296 + $0x2d0] sm:$0xf]
        %v569 = vld [vmem:[%s296 + $0x2d4] sm:$0xf]
        %v570 = vld [vmem:[%s296 + $0x2d8] sm:$0xf]
        %v571 = vld [vmem:[%s296 + $0x2dc] sm:$0xf]
        %v572 = vld [vmem:[%s296 + $0x2e0] sm:$0xf]
        %v573 = vld [vmem:[%s296 + $0x2e4] sm:$0xf]
        %v574 = vld [vmem:[%s296 + $0x2e8] sm:$0xf]
        %v575 = vld [vmem:[%s296 + $0x2ec] sm:$0xf]
        %v576 = vld [vmem:[%s296 + $0x2f0] sm:$0xf]
        %v577 = vld [vmem:[%s296 + $0x2f4] sm:$0xf]
        %v578 = vld [vmem:[%s296 + $0x2f8] sm:$0xf]
        %v579 = vld [vmem:[%s296 + $0x2fc] sm:$0xf]
        %v580 = vld [vmem:[%s296 + $0x300] sm:$0xf]
        %v581 = vld [vmem:[%s296 + $0x304] sm:$0xf]
        %v582 = vld [vmem:[%s296 + $0x308] sm:$0xf]
        %v583 = vld [vmem:[%s296 + $0x30c] sm:$0xf]
        %v584 = vld [vmem:[%s296 + $0x310] sm:$0xf]
        %v585 = vld [vmem:[%s296 + $0x314] sm:$0xf]
        %v586 = vld [vmem:[%s296 + $0x318] sm:$0xf]
        %v587 = vld [vmem:[%s296 + $0x31c] sm:$0xf]
        %v588 = vld [vmem:[%s296 + $0x320] sm:$0xf]
        %v589 = vld [vmem:[%s296 + $0x324] sm:$0xf]
        %v590 = vld [vmem:[%s296 + $0x328] sm:$0xf]
        %v591 = vld [vmem:[%s296 + $0x32c] sm:$0xf]
        %v592 = vld [vmem:[%s296 + $0x330] sm:$0xf]
        %v593 = vld [vmem:[%s296 + $0x334] sm:$0xf]
        %v594 = vld [vmem:[%s296 + $0x338] sm:$0xf]
        %v595 = vld [vmem:[%s296 + $0x33c] sm:$0xf]
        %v596 = vld [vmem:[%s296 + $0x340] sm:$0xf]
        %v597 = vld [vmem:[%s296 + $0x344] sm:$0xf]
        %v598 = vld [vmem:[%s296 + $0x348] sm:$0xf]
        %v599 = vld [vmem:[%s296 + $0x34c] sm:$0xf]
        %v600 = vld [vmem:[%s296 + $0x350] sm:$0xf]
        %v601 = vld [vmem:[%s296 + $0x354] sm:$0xf]
        %v602 = vld [vmem:[%s296 + $0x358] sm:$0xf]
        %v603 = vld [vmem:[%s296 + $0x35c] sm:$0xf]
        %v604 = vld [vmem:[%s296 + $0x360] sm:$0xf]
        %v605 = vld [vmem:[%s296 + $0x364] sm:$0xf]
        %v606 = vld [vmem:[%s296 + $0x368] sm:$0xf]
        %v607 = vld [vmem:[%s296 + $0x36c] sm:$0xf]
        %v608 = vld [vmem:[%s296 + $0x370] sm:$0xf]
        %v609 = vld [vmem:[%s296 + $0x374] sm:$0xf]
        %v610 = vld [vmem:[%s296 + $0x378] sm:$0xf]
        %v611 = vld [vmem:[%s296 + $0x37c] sm:$0xf]
        %v612 = vld [vmem:[%s296 + $0x380] sm:$0xf]
        %v613 = vld [vmem:[%s296 + $0x384] sm:$0xf]
        %v614 = vld [vmem:[%s296 + $0x388] sm:$0xf]
        %v615 = vld [vmem:[%s296 + $0x38c] sm:$0xf]
        %v616 = vld [vmem:[%s296 + $0x390] sm:$0xf]
        %v617 = vld [vmem:[%s296 + $0x394] sm:$0xf]
        %v618 = vld [vmem:[%s296 + $0x398] sm:$0xf]
        %v619 = vld [vmem:[%s296 + $0x39c] sm:$0xf]
        %v620 = vld [vmem:[%s296 + $0x3a0] sm:$0xf]
        %v621 = vld [vmem:[%s296 + $0x3a4] sm:$0xf]
        %v622 = vld [vmem:[%s296 + $0x3a8] sm:$0xf]
        %v623 = vld [vmem:[%s296 + $0x3ac] sm:$0xf]
        %v624 = vld [vmem:[%s296 + $0x3b0] sm:$0xf]
        %v625 = vld [vmem:[%s296 + $0x3b4] sm:$0xf]
        %v626 = vld [vmem:[%s296 + $0x3b8] sm:$0xf]
        %v627 = vld [vmem:[%s296 + $0x3bc] sm:$0xf]
        %v628 = vld [vmem:[%s296 + $0x3c0] sm:$0xf]
        %v629 = vld [vmem:[%s296 + $0x3c4] sm:$0xf]
        %v630 = vld [vmem:[%s296 + $0x3c8] sm:$0xf]
        %v631 = vld [vmem:[%s296 + $0x3cc] sm:$0xf]
        %v632 = vld [vmem:[%s296 + $0x3d0] sm:$0xf]
        %v633 = vld [vmem:[%s296 + $0x3d4] sm:$0xf]
        %v634 = vld [vmem:[%s296 + $0x3d8] sm:$0xf]
        %v635 = vld [vmem:[%s296 + $0x3dc] sm:$0xf]
        %v636 = vld [vmem:[%s296 + $0x3e0] sm:$0xf]
        %v637 = vld [vmem:[%s296 + $0x3e4] sm:$0xf]
        %v638 = vld [vmem:[%s296 + $0x3e8] sm:$0xf]
        %v639 = vld [vmem:[%s296 + $0x3ec] sm:$0xf]
        %v640 = vld [vmem:[%s296 + $0x3f0] sm:$0xf]
        %v641 = vld [vmem:[%s296 + $0x3f4] sm:$0xf]
        %v642 = vld [vmem:[%s296 + $0x3f8] sm:$0xf]
        %v643 = vld [vmem:[%s296 + $0x3fc] sm:$0xf]
        %v644 = vld [vmem:[%s296 + $0x400] sm:$0xf]
        %v645 = vld [vmem:[%s296 + $0x404] sm:$0xf]
        %v646 = vld [vmem:[%s296 + $0x408] sm:$0xf]
        %v647 = vld [vmem:[%s296 + $0x40c] sm:$0xf]
        %v648 = vld [vmem:[%s296 + $0x410] sm:$0xf]
        %v649 = vld [vmem:[%s296 + $0x414] sm:$0xf]
        %v650 = vld [vmem:[%s296 + $0x418] sm:$0xf]
        %v651 = vld [vmem:[%s296 + $0x41c] sm:$0xf]
        %v652 = vld [vmem:[%s296 + $0x420] sm:$0xf]
        %v653 = vld [vmem:[%s296 + $0x424] sm:$0xf]
        %v654 = vld [vmem:[%s296 + $0x428] sm:$0xf]
        %v655 = vld [vmem:[%s296 + $0x42c] sm:$0xf]
        %v656 = vld [vmem:[%s296 + $0x430] sm:$0xf]
        %v657 = vld [vmem:[%s296 + $0x434] sm:$0xf]
        %v658 = vld [vmem:[%s296 + $0x438] sm:$0xf]
        %v659 = vld [vmem:[%s296 + $0x43c] sm:$0xf]
        %v660 = vld [vmem:[%s296 + $0x440] sm:$0xf]
        %v661 = vld [vmem:[%s296 + $0x444] sm:$0xf]
        %v662 = vld [vmem:[%s296 + $0x448] sm:$0xf]
        %v663 = vld [vmem:[%s296 + $0x44c] sm:$0xf]
        %v664 = vld [vmem:[%s296 + $0x450] sm:$0xf]
        %v665 = vld [vmem:[%s296 + $0x454] sm:$0xf]
        %v666 = vld [vmem:[%s296 + $0x458] sm:$0xf]
        %v667 = vld [vmem:[%s296 + $0x45c] sm:$0xf]
        %v668 = vld [vmem:[%s296 + $0x460] sm:$0xf]
        %v669 = vld [vmem:[%s296 + $0x464] sm:$0xf]
        %v670 = vld [vmem:[%s296 + $0x468] sm:$0xf]
        %v671 = vld [vmem:[%s296 + $0x46c] sm:$0xf]
        %v672 = vld [vmem:[%s296 + $0x470] sm:$0xf]
        %v673 = vld [vmem:[%s296 + $0x474] sm:$0xf]
        %v674 = vld [vmem:[%s296 + $0x478] sm:$0xf]
        %v675 = vld [vmem:[%s296 + $0x47c] sm:$0xf]
        %v676 = vld [vmem:[%s296 + $0x480] sm:$0xf]
        %v677 = vld [vmem:[%s296 + $0x484] sm:$0xf]
        %v678 = vld [vmem:[%s296 + $0x488] sm:$0xf]
        %v679 = vld [vmem:[%s296 + $0x48c] sm:$0xf]
        %v680 = vld [vmem:[%s296 + $0x490] sm:$0xf]
        %v681 = vld [vmem:[%s296 + $0x494] sm:$0xf]
        %v682 = vld [vmem:[%s296 + $0x498] sm:$0xf]
        %v683 = vld [vmem:[%s296 + $0x49c] sm:$0xf]
        %v684 = vld [vmem:[%s296 + $0x4a0] sm:$0xf]
        %v685 = vld [vmem:[%s296 + $0x4a4] sm:$0xf]
        %v686 = vld [vmem:[%s296 + $0x4a8] sm:$0xf]
        %v687 = vld [vmem:[%s296 + $0x4ac] sm:$0xf]
        %v688 = vld [vmem:[%s296 + $0x4b0] sm:$0xf]
        %v689 = vld [vmem:[%s296 + $0x4b4] sm:$0xf]
        %v690 = vld [vmem:[%s296 + $0x4b8] sm:$0xf]
        %v691 = vld [vmem:[%s296 + $0x4bc] sm:$0xf]
        %v692 = vld [vmem:[%s296 + $0x4c0] sm:$0xf]
        %v693 = vld [vmem:[%s296 + $0x4c4] sm:$0xf]
        %v694 = vld [vmem:[%s296 + $0x4c8] sm:$0xf]
        %v695 = vld [vmem:[%s296 + $0x4cc] sm:$0xf]
        %v696 = vld [vmem:[%s296 + $0x4d0] sm:$0xf]
        %v697 = vld [vmem:[%s296 + $0x4d4] sm:$0xf]
        %v698 = vld [vmem:[%s296 + $0x4d8] sm:$0xf]
        %v699 = vld [vmem:[%s296 + $0x4dc] sm:$0xf]
        %v700 = vld [vmem:[%s296 + $0x4e0] sm:$0xf]
        %v701 = vld [vmem:[%s296 + $0x4e4] sm:$0xf]
        %v702 = vld [vmem:[%s296 + $0x4e8] sm:$0xf]
        %v703 = vld [vmem:[%s296 + $0x4ec] sm:$0xf]
        %v704 = vld [vmem:[%s296 + $0x4f0] sm:$0xf]
        %v705 = vld [vmem:[%s296 + $0x4f4] sm:$0xf]
        %v706 = vld [vmem:[%s296 + $0x4f8] sm:$0xf]
        %v707 = vld [vmem:[%s296 + $0x4fc] sm:$0xf]
        %v718 = vunpack.c.l.b16 %v378
        %v719 = vunpack.c.h.b16 %v378
        %v720 = vunpack.c.l.b16 %v379
        %v721 = vunpack.c.h.b16 %v379
        %v722 = vunpack.c.l.b16 %v380
        %v723 = vunpack.c.h.b16 %v380
        %v724 = vunpack.c.l.b16 %v381
        %v725 = vunpack.c.h.b16 %v381
        %v726 = vunpack.c.l.b16 %v382
        %v727 = vunpack.c.h.b16 %v382
        %v728 = vunpack.c.l.b16 %v383
        %v729 = vunpack.c.h.b16 %v383
        %v730 = vunpack.c.l.b16 %v384
        %v731 = vunpack.c.h.b16 %v384
        %v732 = vunpack.c.l.b16 %v385
        %v733 = vunpack.c.h.b16 %v385
        %v734 = vunpack.c.l.b16 %v386
        %v735 = vunpack.c.h.b16 %v386
        %v736 = vunpack.c.l.b16 %v387
        %v737 = vunpack.c.h.b16 %v387
        %v738 = vpack.c.b16 %v718, %v718
        %v739 = vpack.c.b16 %v719, %v719
        %v740 = vpack.c.b16 %v720, %v720
        %v741 = vpack.c.b16 %v721, %v721
        %v742 = vpack.c.b16 %v722, %v722
        %v743 = vpack.c.b16 %v723, %v723
        %v744 = vpack.c.b16 %v724, %v724
        %v745 = vpack.c.b16 %v725, %v725
        %v746 = vpack.c.b16 %v726, %v726
        %v747 = vpack.c.b16 %v727, %v727
        %v748 = vpack.c.b16 %v728, %v728
        %v749 = vpack.c.b16 %v729, %v729
        %v750 = vpack.c.b16 %v730, %v730
        %v751 = vpack.c.b16 %v731, %v731
        %v752 = vpack.c.b16 %v732, %v732
        %v753 = vpack.c.b16 %v733, %v733
        %v754 = vpack.c.b16 %v734, %v734
        %v755 = vpack.c.b16 %v735, %v735
        %v756 = vpack.c.b16 %v736, %v736
        %v757 = vpack.c.b16 %v737, %v737
        %v1098 = vunpack.c.l.b16 %v388
        %v1099 = vunpack.c.l.b16 %v389
        %v1100 = vunpack.c.l.b16 %v390
        %v1101 = vunpack.c.l.b16 %v391
        %v1102 = vunpack.c.l.b16 %v392
        %v1103 = vunpack.c.l.b16 %v393
        %v1104 = vunpack.c.l.b16 %v394
        %v1105 = vunpack.c.l.b16 %v395
        %v1106 = vunpack.c.l.b16 %v396
        %v1107 = vunpack.c.l.b16 %v397
        %v1108 = vunpack.c.l.b16 %v398
        %v1109 = vunpack.c.l.b16 %v399
        %v1110 = vunpack.c.l.b16 %v400
        %v1111 = vunpack.c.l.b16 %v401
        %v1112 = vunpack.c.l.b16 %v402
        %v1113 = vunpack.c.l.b16 %v403
        %v1114 = vunpack.c.l.b16 %v404
        %v1115 = vunpack.c.l.b16 %v405
        %v1116 = vunpack.c.l.b16 %v406
        %v1117 = vunpack.c.l.b16 %v407
        %v1118 = vunpack.c.l.b16 %v408
        %v1119 = vunpack.c.l.b16 %v409
        %v1120 = vunpack.c.l.b16 %v410
        %v1121 = vunpack.c.l.b16 %v411
        %v1122 = vunpack.c.l.b16 %v412
        %v1123 = vunpack.c.l.b16 %v413
        %v1124 = vunpack.c.l.b16 %v414
        %v1125 = vunpack.c.l.b16 %v415
        %v1126 = vunpack.c.l.b16 %v416
        %v1127 = vunpack.c.l.b16 %v417
        %v1128 = vunpack.c.l.b16 %v418
        %v1129 = vunpack.c.l.b16 %v419
        %v1130 = vunpack.c.l.b16 %v420
        %v1131 = vunpack.c.l.b16 %v421
        %v1132 = vunpack.c.l.b16 %v422
        %v1133 = vunpack.c.l.b16 %v423
        %v1134 = vunpack.c.l.b16 %v424
        %v1135 = vunpack.c.l.b16 %v425
        %v1136 = vunpack.c.l.b16 %v426
        %v1137 = vunpack.c.l.b16 %v427
        %v1138 = vunpack.c.l.b16 %v428
        %v1139 = vunpack.c.l.b16 %v429
        %v1140 = vunpack.c.l.b16 %v430
        %v1141 = vunpack.c.l.b16 %v431
        %v1142 = vunpack.c.l.b16 %v432
        %v1143 = vunpack.c.l.b16 %v433
        %v1144 = vunpack.c.l.b16 %v434
        %v1145 = vunpack.c.l.b16 %v435
        %v1146 = vunpack.c.l.b16 %v436
        %v1147 = vunpack.c.l.b16 %v437
        %v1148 = vunpack.c.l.b16 %v438
        %v1149 = vunpack.c.l.b16 %v439
        %v1150 = vunpack.c.l.b16 %v440
        %v1151 = vunpack.c.l.b16 %v441
        %v1152 = vunpack.c.l.b16 %v442
        %v1153 = vunpack.c.l.b16 %v443
        %v1154 = vunpack.c.l.b16 %v444
        %v1155 = vunpack.c.l.b16 %v445
        %v1156 = vunpack.c.l.b16 %v446
        %v1157 = vunpack.c.l.b16 %v447
        %v1158 = vunpack.c.l.b16 %v448
        %v1159 = vunpack.c.l.b16 %v449
        %v1160 = vunpack.c.l.b16 %v450
        %v1161 = vunpack.c.l.b16 %v451
        %v1162 = vunpack.c.l.b16 %v452
        %v1163 = vunpack.c.l.b16 %v453
        %v1164 = vunpack.c.l.b16 %v454
        %v1165 = vunpack.c.l.b16 %v455
        %v1166 = vunpack.c.l.b16 %v456
        %v1167 = vunpack.c.l.b16 %v457
        %v1168 = vunpack.c.l.b16 %v458
        %v1169 = vunpack.c.l.b16 %v459
        %v1170 = vunpack.c.l.b16 %v460
        %v1171 = vunpack.c.l.b16 %v461
        %v1172 = vunpack.c.l.b16 %v462
        %v1173 = vunpack.c.l.b16 %v463
        %v1174 = vunpack.c.l.b16 %v464
        %v1175 = vunpack.c.l.b16 %v465
        %v1176 = vunpack.c.l.b16 %v466
        %v1177 = vunpack.c.l.b16 %v467
        %v1178 = vunpack.c.l.b16 %v468
        %v1179 = vunpack.c.l.b16 %v469
        %v1180 = vunpack.c.l.b16 %v470
        %v1181 = vunpack.c.l.b16 %v471
        %v1182 = vunpack.c.l.b16 %v472
        %v1183 = vunpack.c.l.b16 %v473
        %v1184 = vunpack.c.l.b16 %v474
        %v1185 = vunpack.c.l.b16 %v475
        %v1186 = vunpack.c.l.b16 %v476
        %v1187 = vunpack.c.l.b16 %v477
        %v1188 = vunpack.c.l.b16 %v478
        %v1189 = vunpack.c.l.b16 %v479
        %v1190 = vunpack.c.l.b16 %v480
        %v1191 = vunpack.c.l.b16 %v481
        %v1192 = vunpack.c.l.b16 %v482
        %v1193 = vunpack.c.l.b16 %v483
        %v1194 = vunpack.c.l.b16 %v484
        %v1195 = vunpack.c.l.b16 %v485
        %v1196 = vunpack.c.l.b16 %v486
        %v1197 = vunpack.c.l.b16 %v487
        %v1198 = vunpack.c.l.b16 %v488
        %v1199 = vunpack.c.l.b16 %v489
        %v1200 = vunpack.c.l.b16 %v490
        %v1201 = vunpack.c.l.b16 %v491
        %v1202 = vunpack.c.l.b16 %v492
        %v1203 = vunpack.c.l.b16 %v493
        %v1204 = vunpack.c.l.b16 %v494
        %v1205 = vunpack.c.l.b16 %v495
        %v1206 = vunpack.c.l.b16 %v496
        %v1207 = vunpack.c.l.b16 %v497
        %v1208 = vunpack.c.l.b16 %v498
        %v1209 = vunpack.c.l.b16 %v499
        %v1210 = vunpack.c.l.b16 %v500
        %v1211 = vunpack.c.l.b16 %v501
        %v1212 = vunpack.c.l.b16 %v502
        %v1213 = vunpack.c.l.b16 %v503
        %v1214 = vunpack.c.l.b16 %v504
        %v1215 = vunpack.c.l.b16 %v505
        %v1216 = vunpack.c.l.b16 %v506
        %v1217 = vunpack.c.l.b16 %v507
        %v1218 = vunpack.c.l.b16 %v508
        %v1219 = vunpack.c.l.b16 %v509
        %v1220 = vunpack.c.l.b16 %v510
        %v1221 = vunpack.c.l.b16 %v511
        %v1222 = vunpack.c.l.b16 %v512
        %v1223 = vunpack.c.l.b16 %v513
        %v1224 = vunpack.c.l.b16 %v514
        %v1225 = vunpack.c.l.b16 %v515
        %v1226 = vunpack.c.l.b16 %v516
        %v1227 = vunpack.c.l.b16 %v517
        %v1228 = vunpack.c.l.b16 %v518
        %v1229 = vunpack.c.l.b16 %v519
        %v1230 = vunpack.c.l.b16 %v520
        %v1231 = vunpack.c.l.b16 %v521
        %v1232 = vunpack.c.l.b16 %v522
        %v1233 = vunpack.c.l.b16 %v523
        %v1234 = vunpack.c.l.b16 %v524
        %v1235 = vunpack.c.l.b16 %v525
        %v1236 = vunpack.c.l.b16 %v526
        %v1237 = vunpack.c.l.b16 %v527
        %v1238 = vunpack.c.l.b16 %v528
        %v1239 = vunpack.c.l.b16 %v529
        %v1240 = vunpack.c.l.b16 %v530
        %v1241 = vunpack.c.l.b16 %v531
        %v1242 = vunpack.c.l.b16 %v532
        %v1243 = vunpack.c.l.b16 %v533
        %v1244 = vunpack.c.l.b16 %v534
        %v1245 = vunpack.c.l.b16 %v535
        %v1246 = vunpack.c.l.b16 %v536
        %v1247 = vunpack.c.l.b16 %v537
        %v1248 = vunpack.c.l.b16 %v538
        %v1249 = vunpack.c.l.b16 %v539
        %v1250 = vunpack.c.l.b16 %v540
        %v1251 = vunpack.c.l.b16 %v541
        %v1252 = vunpack.c.l.b16 %v542
        %v1253 = vunpack.c.l.b16 %v543
        %v1254 = vunpack.c.l.b16 %v544
        %v1255 = vunpack.c.l.b16 %v545
        %v1256 = vunpack.c.l.b16 %v546
        %v1257 = vunpack.c.l.b16 %v547
        %v1258 = vunpack.c.l.b16 %v548
        %v1259 = vunpack.c.l.b16 %v549
        %v1260 = vunpack.c.l.b16 %v550
        %v1261 = vunpack.c.l.b16 %v551
        %v1262 = vunpack.c.l.b16 %v552
        %v1263 = vunpack.c.l.b16 %v553
        %v1264 = vunpack.c.l.b16 %v554
        %v1265 = vunpack.c.l.b16 %v555
        %v1266 = vunpack.c.l.b16 %v556
        %v1267 = vunpack.c.l.b16 %v557
        %v1268 = vunpack.c.l.b16 %v558
        %v1269 = vunpack.c.l.b16 %v559
        %v1270 = vunpack.c.l.b16 %v560
        %v1271 = vunpack.c.l.b16 %v561
        %v1272 = vunpack.c.l.b16 %v562
        %v1273 = vunpack.c.l.b16 %v563
        %v1274 = vunpack.c.l.b16 %v564
        %v1275 = vunpack.c.l.b16 %v565
        %v1276 = vunpack.c.l.b16 %v566
        %v1277 = vunpack.c.l.b16 %v567
        %v1278 = vunpack.c.l.b16 %v568
        %v1279 = vunpack.c.l.b16 %v569
        %v1280 = vunpack.c.l.b16 %v570
        %v1281 = vunpack.c.l.b16 %v571
        %v1282 = vunpack.c.l.b16 %v572
        %v1283 = vunpack.c.l.b16 %v573
        %v1284 = vunpack.c.l.b16 %v574
        %v1285 = vunpack.c.l.b16 %v575
        %v1286 = vunpack.c.l.b16 %v576
        %v1287 = vunpack.c.l.b16 %v577
        %v1288 = vunpack.c.l.b16 %v578
        %v1289 = vunpack.c.l.b16 %v579
        %v1290 = vunpack.c.l.b16 %v580
        %v1291 = vunpack.c.l.b16 %v581
        %v1292 = vunpack.c.l.b16 %v582
        %v1293 = vunpack.c.l.b16 %v583
        %v1294 = vunpack.c.l.b16 %v584
        %v1295 = vunpack.c.l.b16 %v585
        %v1296 = vunpack.c.l.b16 %v586
        %v1297 = vunpack.c.l.b16 %v587
        %v1298 = vunpack.c.l.b16 %v588
        %v1299 = vunpack.c.l.b16 %v589
        %v1300 = vunpack.c.l.b16 %v590
        %v1301 = vunpack.c.l.b16 %v591
        %v1302 = vunpack.c.l.b16 %v592
        %v1303 = vunpack.c.l.b16 %v593
        %v1304 = vunpack.c.l.b16 %v594
        %v1305 = vunpack.c.l.b16 %v595
        %v1306 = vunpack.c.l.b16 %v596
        %v1307 = vunpack.c.l.b16 %v597
        %v1308 = vunpack.c.l.b16 %v598
        %v1309 = vunpack.c.l.b16 %v599
        %v1310 = vunpack.c.l.b16 %v600
        %v1311 = vunpack.c.l.b16 %v601
        %v1312 = vunpack.c.l.b16 %v602
        %v1313 = vunpack.c.l.b16 %v603
        %v1314 = vunpack.c.l.b16 %v604
        %v1315 = vunpack.c.l.b16 %v605
        %v1316 = vunpack.c.l.b16 %v606
        %v1317 = vunpack.c.l.b16 %v607
        %v1318 = vunpack.c.l.b16 %v608
        %v1319 = vunpack.c.l.b16 %v609
        %v1320 = vunpack.c.l.b16 %v610
        %v1321 = vunpack.c.l.b16 %v611
        %v1322 = vunpack.c.l.b16 %v612
        %v1323 = vunpack.c.l.b16 %v613
        %v1324 = vunpack.c.l.b16 %v614
        %v1325 = vunpack.c.l.b16 %v615
        %v1326 = vunpack.c.l.b16 %v616
        %v1327 = vunpack.c.l.b16 %v617
        %v1328 = vunpack.c.l.b16 %v618
        %v1329 = vunpack.c.l.b16 %v619
        %v1330 = vunpack.c.l.b16 %v620
        %v1331 = vunpack.c.l.b16 %v621
        %v1332 = vunpack.c.l.b16 %v622
        %v1333 = vunpack.c.l.b16 %v623
        %v1334 = vunpack.c.l.b16 %v624
        %v1335 = vunpack.c.l.b16 %v625
        %v1336 = vunpack.c.l.b16 %v626
        %v1337 = vunpack.c.l.b16 %v627
        %v1338 = vunpack.c.l.b16 %v628
        %v1339 = vunpack.c.l.b16 %v629
        %v1340 = vunpack.c.l.b16 %v630
        %v1341 = vunpack.c.l.b16 %v631
        %v1342 = vunpack.c.l.b16 %v632
        %v1343 = vunpack.c.l.b16 %v633
        %v1344 = vunpack.c.l.b16 %v634
        %v1345 = vunpack.c.l.b16 %v635
        %v1346 = vunpack.c.l.b16 %v636
        %v1347 = vunpack.c.l.b16 %v637
        %v1348 = vunpack.c.l.b16 %v638
        %v1349 = vunpack.c.l.b16 %v639
        %v1350 = vunpack.c.l.b16 %v640
        %v1351 = vunpack.c.l.b16 %v641
        %v1352 = vunpack.c.l.b16 %v642
        %v1353 = vunpack.c.l.b16 %v643
        %v1354 = vunpack.c.l.b16 %v644
        %v1355 = vunpack.c.l.b16 %v645
        %v1356 = vunpack.c.l.b16 %v646
        %v1357 = vunpack.c.l.b16 %v647
        %v1358 = vunpack.c.l.b16 %v648
        %v1359 = vunpack.c.l.b16 %v649
        %v1360 = vunpack.c.l.b16 %v650
        %v1361 = vunpack.c.l.b16 %v651
        %v1362 = vunpack.c.l.b16 %v652
        %v1363 = vunpack.c.l.b16 %v653
        %v1364 = vunpack.c.l.b16 %v654
        %v1365 = vunpack.c.l.b16 %v655
        %v1366 = vunpack.c.l.b16 %v656
        %v1367 = vunpack.c.l.b16 %v657
        %v1368 = vunpack.c.l.b16 %v658
        %v1369 = vunpack.c.l.b16 %v659
        %v1370 = vunpack.c.l.b16 %v660
        %v1371 = vunpack.c.l.b16 %v661
        %v1372 = vunpack.c.l.b16 %v662
        %v1373 = vunpack.c.l.b16 %v663
        %v1374 = vunpack.c.l.b16 %v664
        %v1375 = vunpack.c.l.b16 %v665
        %v1376 = vunpack.c.l.b16 %v666
        %v1377 = vunpack.c.l.b16 %v667
        %v1378 = vunpack.c.l.b16 %v668
        %v1379 = vunpack.c.l.b16 %v669
        %v1380 = vunpack.c.l.b16 %v670
        %v1381 = vunpack.c.l.b16 %v671
        %v1382 = vunpack.c.l.b16 %v672
        %v1383 = vunpack.c.l.b16 %v673
        %v1384 = vunpack.c.l.b16 %v674
        %v1385 = vunpack.c.l.b16 %v675
        %v1386 = vunpack.c.l.b16 %v676
        %v1387 = vunpack.c.l.b16 %v677
        %v1388 = vunpack.c.l.b16 %v678
        %v1389 = vunpack.c.l.b16 %v679
        %v1390 = vunpack.c.l.b16 %v680
        %v1391 = vunpack.c.l.b16 %v681
        %v1392 = vunpack.c.l.b16 %v682
        %v1393 = vunpack.c.l.b16 %v683
        %v1394 = vunpack.c.l.b16 %v684
        %v1395 = vunpack.c.l.b16 %v685
        %v1396 = vunpack.c.l.b16 %v686
        %v1397 = vunpack.c.l.b16 %v687
        %v1398 = vunpack.c.l.b16 %v688
        %v1399 = vunpack.c.l.b16 %v689
        %v1400 = vunpack.c.l.b16 %v690
        %v1401 = vunpack.c.l.b16 %v691
        %v1402 = vunpack.c.l.b16 %v692
        %v1403 = vunpack.c.l.b16 %v693
        %v1404 = vunpack.c.l.b16 %v694
        %v1405 = vunpack.c.l.b16 %v695
        %v1406 = vunpack.c.l.b16 %v696
        %v1407 = vunpack.c.l.b16 %v697
        %v1408 = vunpack.c.l.b16 %v698
        %v1409 = vunpack.c.l.b16 %v699
        %v1410 = vunpack.c.l.b16 %v700
        %v1411 = vunpack.c.l.b16 %v701
        %v1412 = vunpack.c.l.b16 %v702
        %v1413 = vunpack.c.l.b16 %v703
        %v1414 = vunpack.c.l.b16 %v704
        %v1415 = vunpack.c.l.b16 %v705
        %v1416 = vunpack.c.l.b16 %v706
        %v1417 = vunpack.c.l.b16 %v707
        %v1418 = vpack.c.b16 %v1099, %v1098
        %v1419 = vpack.c.b16 %v1101, %v1100
        %v1420 = vpack.c.b16 %v1103, %v1102
        %v1421 = vpack.c.b16 %v1105, %v1104
        %v1422 = vpack.c.b16 %v1107, %v1106
        %v1423 = vpack.c.b16 %v1109, %v1108
        %v1424 = vpack.c.b16 %v1111, %v1110
        %v1425 = vpack.c.b16 %v1113, %v1112
        %v1426 = vpack.c.b16 %v1115, %v1114
        %v1427 = vpack.c.b16 %v1117, %v1116
        %v1428 = vpack.c.b16 %v1119, %v1118
        %v1429 = vpack.c.b16 %v1121, %v1120
        %v1430 = vpack.c.b16 %v1123, %v1122
        %v1431 = vpack.c.b16 %v1125, %v1124
        %v1432 = vpack.c.b16 %v1127, %v1126
        %v1433 = vpack.c.b16 %v1129, %v1128
        %v1434 = vpack.c.b16 %v1131, %v1130
        %v1435 = vpack.c.b16 %v1133, %v1132
        %v1436 = vpack.c.b16 %v1135, %v1134
        %v1437 = vpack.c.b16 %v1137, %v1136
        %v1438 = vpack.c.b16 %v1139, %v1138
        %v1439 = vpack.c.b16 %v1141, %v1140
        %v1440 = vpack.c.b16 %v1143, %v1142
        %v1441 = vpack.c.b16 %v1145, %v1144
        %v1442 = vpack.c.b16 %v1147, %v1146
        %v1443 = vpack.c.b16 %v1149, %v1148
        %v1444 = vpack.c.b16 %v1151, %v1150
        %v1445 = vpack.c.b16 %v1153, %v1152
        %v1446 = vpack.c.b16 %v1155, %v1154
        %v1447 = vpack.c.b16 %v1157, %v1156
        %v1448 = vpack.c.b16 %v1159, %v1158
        %v1449 = vpack.c.b16 %v1161, %v1160
        %v1450 = vpack.c.b16 %v1163, %v1162
        %v1451 = vpack.c.b16 %v1165, %v1164
        %v1452 = vpack.c.b16 %v1167, %v1166
        %v1453 = vpack.c.b16 %v1169, %v1168
        %v1454 = vpack.c.b16 %v1171, %v1170
        %v1455 = vpack.c.b16 %v1173, %v1172
        %v1456 = vpack.c.b16 %v1175, %v1174
        %v1457 = vpack.c.b16 %v1177, %v1176
        %v1458 = vpack.c.b16 %v1179, %v1178
        %v1459 = vpack.c.b16 %v1181, %v1180
        %v1460 = vpack.c.b16 %v1183, %v1182
        %v1461 = vpack.c.b16 %v1185, %v1184
        %v1462 = vpack.c.b16 %v1187, %v1186
        %v1463 = vpack.c.b16 %v1189, %v1188
        %v1464 = vpack.c.b16 %v1191, %v1190
        %v1465 = vpack.c.b16 %v1193, %v1192
        %v1466 = vpack.c.b16 %v1195, %v1194
        %v1467 = vpack.c.b16 %v1197, %v1196
        %v1468 = vpack.c.b16 %v1199, %v1198
        %v1469 = vpack.c.b16 %v1201, %v1200
        %v1470 = vpack.c.b16 %v1203, %v1202
        %v1471 = vpack.c.b16 %v1205, %v1204
        %v1472 = vpack.c.b16 %v1207, %v1206
        %v1473 = vpack.c.b16 %v1209, %v1208
        %v1474 = vpack.c.b16 %v1211, %v1210
        %v1475 = vpack.c.b16 %v1213, %v1212
        %v1476 = vpack.c.b16 %v1215, %v1214
        %v1477 = vpack.c.b16 %v1217, %v1216
        %v1478 = vpack.c.b16 %v1219, %v1218
        %v1479 = vpack.c.b16 %v1221, %v1220
        %v1480 = vpack.c.b16 %v1223, %v1222
        %v1481 = vpack.c.b16 %v1225, %v1224
        %v1482 = vpack.c.b16 %v1227, %v1226
        %v1483 = vpack.c.b16 %v1229, %v1228
        %v1484 = vpack.c.b16 %v1231, %v1230
        %v1485 = vpack.c.b16 %v1233, %v1232
        %v1486 = vpack.c.b16 %v1235, %v1234
        %v1487 = vpack.c.b16 %v1237, %v1236
        %v1488 = vpack.c.b16 %v1239, %v1238
        %v1489 = vpack.c.b16 %v1241, %v1240
        %v1490 = vpack.c.b16 %v1243, %v1242
        %v1491 = vpack.c.b16 %v1245, %v1244
        %v1492 = vpack.c.b16 %v1247, %v1246
        %v1493 = vpack.c.b16 %v1249, %v1248
        %v1494 = vpack.c.b16 %v1251, %v1250
        %v1495 = vpack.c.b16 %v1253, %v1252
        %v1496 = vpack.c.b16 %v1255, %v1254
        %v1497 = vpack.c.b16 %v1257, %v1256
        %v1498 = vpack.c.b16 %v1259, %v1258
        %v1499 = vpack.c.b16 %v1261, %v1260
        %v1500 = vpack.c.b16 %v1263, %v1262
        %v1501 = vpack.c.b16 %v1265, %v1264
        %v1502 = vpack.c.b16 %v1267, %v1266
        %v1503 = vpack.c.b16 %v1269, %v1268
        %v1504 = vpack.c.b16 %v1271, %v1270
        %v1505 = vpack.c.b16 %v1273, %v1272
        %v1506 = vpack.c.b16 %v1275, %v1274
        %v1507 = vpack.c.b16 %v1277, %v1276
        %v1508 = vpack.c.b16 %v1279, %v1278
        %v1509 = vpack.c.b16 %v1281, %v1280
        %v1510 = vpack.c.b16 %v1283, %v1282
        %v1511 = vpack.c.b16 %v1285, %v1284
        %v1512 = vpack.c.b16 %v1287, %v1286
        %v1513 = vpack.c.b16 %v1289, %v1288
        %v1514 = vpack.c.b16 %v1291, %v1290
        %v1515 = vpack.c.b16 %v1293, %v1292
        %v1516 = vpack.c.b16 %v1295, %v1294
        %v1517 = vpack.c.b16 %v1297, %v1296
        %v1518 = vpack.c.b16 %v1299, %v1298
        %v1519 = vpack.c.b16 %v1301, %v1300
        %v1520 = vpack.c.b16 %v1303, %v1302
        %v1521 = vpack.c.b16 %v1305, %v1304
        %v1522 = vpack.c.b16 %v1307, %v1306
        %v1523 = vpack.c.b16 %v1309, %v1308
        %v1524 = vpack.c.b16 %v1311, %v1310
        %v1525 = vpack.c.b16 %v1313, %v1312
        %v1526 = vpack.c.b16 %v1315, %v1314
        %v1527 = vpack.c.b16 %v1317, %v1316
        %v1528 = vpack.c.b16 %v1319, %v1318
        %v1529 = vpack.c.b16 %v1321, %v1320
        %v1530 = vpack.c.b16 %v1323, %v1322
        %v1531 = vpack.c.b16 %v1325, %v1324
        %v1532 = vpack.c.b16 %v1327, %v1326
        %v1533 = vpack.c.b16 %v1329, %v1328
        %v1534 = vpack.c.b16 %v1331, %v1330
        %v1535 = vpack.c.b16 %v1333, %v1332
        %v1536 = vpack.c.b16 %v1335, %v1334
        %v1537 = vpack.c.b16 %v1337, %v1336
        %v1538 = vpack.c.b16 %v1339, %v1338
        %v1539 = vpack.c.b16 %v1341, %v1340
        %v1540 = vpack.c.b16 %v1343, %v1342
        %v1541 = vpack.c.b16 %v1345, %v1344
        %v1542 = vpack.c.b16 %v1347, %v1346
        %v1543 = vpack.c.b16 %v1349, %v1348
        %v1544 = vpack.c.b16 %v1351, %v1350
        %v1545 = vpack.c.b16 %v1353, %v1352
        %v1546 = vpack.c.b16 %v1355, %v1354
        %v1547 = vpack.c.b16 %v1357, %v1356
        %v1548 = vpack.c.b16 %v1359, %v1358
        %v1549 = vpack.c.b16 %v1361, %v1360
        %v1550 = vpack.c.b16 %v1363, %v1362
        %v1551 = vpack.c.b16 %v1365, %v1364
        %v1552 = vpack.c.b16 %v1367, %v1366
        %v1553 = vpack.c.b16 %v1369, %v1368
        %v1554 = vpack.c.b16 %v1371, %v1370
        %v1555 = vpack.c.b16 %v1373, %v1372
        %v1556 = vpack.c.b16 %v1375, %v1374
        %v1557 = vpack.c.b16 %v1377, %v1376
        %v1558 = vpack.c.b16 %v1379, %v1378
        %v1559 = vpack.c.b16 %v1381, %v1380
        %v1560 = vpack.c.b16 %v1383, %v1382
        %v1561 = vpack.c.b16 %v1385, %v1384
        %v1562 = vpack.c.b16 %v1387, %v1386
        %v1563 = vpack.c.b16 %v1389, %v1388
        %v1564 = vpack.c.b16 %v1391, %v1390
        %v1565 = vpack.c.b16 %v1393, %v1392
        %v1566 = vpack.c.b16 %v1395, %v1394
        %v1567 = vpack.c.b16 %v1397, %v1396
        %v1568 = vpack.c.b16 %v1399, %v1398
        %v1569 = vpack.c.b16 %v1401, %v1400
        %v1570 = vpack.c.b16 %v1403, %v1402
        %v1571 = vpack.c.b16 %v1405, %v1404
        %v1572 = vpack.c.b16 %v1407, %v1406
        %v1573 = vpack.c.b16 %v1409, %v1408
        %v1574 = vpack.c.b16 %v1411, %v1410
        %v1575 = vpack.c.b16 %v1413, %v1412
        %v1576 = vpack.c.b16 %v1415, %v1414
        %v1577 = vpack.c.b16 %v1417, %v1416
        %1738 = vmatpush.bf16.msra.mxu0 %v1425
        %1739 = vmatpush.bf16.msra.mxu0 %v1424
        %1740 = vmatpush.bf16.msra.mxu0 %v1423
        %1741 = vmatpush.bf16.msra.mxu0 %v1422
        %1742 = vmatpush.bf16.msra.mxu0 %v1421
        %1743 = vmatpush.bf16.msra.mxu0 %v1420
        %1744 = vmatpush.bf16.msra.mxu0 %v1419
        %1745 = vmatpush.bf16.msra.mxu0 %v1418
        %1746 = vmatmul.bf16.gmra.mxu0 %v738
        %v1747 = vpop.f32.mrf.mxu0
        %v1748 = vadd.f32 0.0, %v1747
        %v1749 = vpop.f32.mrf.mxu0
        %1750 = vdwg.mxu0
        %1751 = vmatpush.bf16.msra.mxu0 %v1433
        %1752 = vmatpush.bf16.msra.mxu0 %v1432
        %1753 = vmatpush.bf16.msra.mxu0 %v1431
        %1754 = vmatpush.bf16.msra.mxu0 %v1430
        %1755 = vmatpush.bf16.msra.mxu0 %v1429
        %1756 = vmatpush.bf16.msra.mxu0 %v1428
        %1757 = vmatpush.bf16.msra.mxu0 %v1427
        %1758 = vmatpush.bf16.msra.mxu0 %v1426
        %1759 = vmatmul.bf16.gmra.mxu0 %v739
        %v1760 = vpop.f32.mrf.mxu0
        %v1761 = vadd.f32 %v1748, %v1760
        %v1762 = vpop.f32.mrf.mxu0
        %1763 = vdwg.mxu0
        %1764 = vmatpush.bf16.msra.mxu0 %v1441
        %1765 = vmatpush.bf16.msra.mxu0 %v1440
        %1766 = vmatpush.bf16.msra.mxu0 %v1439
        %1767 = vmatpush.bf16.msra.mxu0 %v1438
        %1768 = vmatpush.bf16.msra.mxu0 %v1437
        %1769 = vmatpush.bf16.msra.mxu0 %v1436
        %1770 = vmatpush.bf16.msra.mxu0 %v1435
        %1771 = vmatpush.bf16.msra.mxu0 %v1434
        %1772 = vmatmul.bf16.gmra.mxu0 %v740
        %v1773 = vpop.f32.mrf.mxu0
        %v1774 = vadd.f32 %v1761, %v1773
        %v1775 = vpop.f32.mrf.mxu0
        %1776 = vdwg.mxu0
        %1777 = vmatpush.bf16.msra.mxu0 %v1449
        %1778 = vmatpush.bf16.msra.mxu0 %v1448
        %1779 = vmatpush.bf16.msra.mxu0 %v1447
        %1780 = vmatpush.bf16.msra.mxu0 %v1446
        %1781 = vmatpush.bf16.msra.mxu0 %v1445
        %1782 = vmatpush.bf16.msra.mxu0 %v1444
        %1783 = vmatpush.bf16.msra.mxu0 %v1443
        %1784 = vmatpush.bf16.msra.mxu0 %v1442
        %1785 = vmatmul.bf16.gmra.mxu0 %v741
        %v1786 = vpop.f32.mrf.mxu0
        %v1787 = vadd.f32 %v1774, %v1786
        %v1788 = vpop.f32.mrf.mxu0
        %1789 = vdwg.mxu0
        %1790 = vmatpush.bf16.msra.mxu0 %v1457
        %1791 = vmatpush.bf16.msra.mxu0 %v1456
        %1792 = vmatpush.bf16.msra.mxu0 %v1455
        %1793 = vmatpush.bf16.msra.mxu0 %v1454
        %1794 = vmatpush.bf16.msra.mxu0 %v1453
        %1795 = vmatpush.bf16.msra.mxu0 %v1452
        %1796 = vmatpush.bf16.msra.mxu0 %v1451
        %1797 = vmatpush.bf16.msra.mxu0 %v1450
        %1798 = vmatmul.bf16.gmra.mxu0 %v742
        %v1799 = vpop.f32.mrf.mxu0
        %v1800 = vadd.f32 %v1787, %v1799
        %v1801 = vpop.f32.mrf.mxu0
        %1802 = vdwg.mxu0
        %1803 = vmatpush.bf16.msra.mxu0 %v1465
        %1804 = vmatpush.bf16.msra.mxu0 %v1464
        %1805 = vmatpush.bf16.msra.mxu0 %v1463
        %1806 = vmatpush.bf16.msra.mxu0 %v1462
        %1807 = vmatpush.bf16.msra.mxu0 %v1461
        %1808 = vmatpush.bf16.msra.mxu0 %v1460
        %1809 = vmatpush.bf16.msra.mxu0 %v1459
        %1810 = vmatpush.bf16.msra.mxu0 %v1458
        %1811 = vmatmul.bf16.gmra.mxu0 %v743
        %v1812 = vpop.f32.mrf.mxu0
        %v1813 = vadd.f32 %v1800, %v1812
        %v1814 = vpop.f32.mrf.mxu0
        %1815 = vdwg.mxu0
        %1816 = vmatpush.bf16.msra.mxu0 %v1473
        %1817 = vmatpush.bf16.msra.mxu0 %v1472
        %1818 = vmatpush.bf16.msra.mxu0 %v1471
        %1819 = vmatpush.bf16.msra.mxu0 %v1470
        %1820 = vmatpush.bf16.msra.mxu0 %v1469
        %1821 = vmatpush.bf16.msra.mxu0 %v1468
        %1822 = vmatpush.bf16.msra.mxu0 %v1467
        %1823 = vmatpush.bf16.msra.mxu0 %v1466
        %1824 = vmatmul.bf16.gmra.mxu0 %v744
        %v1825 = vpop.f32.mrf.mxu0
        %v1826 = vadd.f32 %v1813, %v1825
        %v1827 = vpop.f32.mrf.mxu0
        %1828 = vdwg.mxu0
        %1829 = vmatpush.bf16.msra.mxu0 %v1481
        %1830 = vmatpush.bf16.msra.mxu0 %v1480
        %1831 = vmatpush.bf16.msra.mxu0 %v1479
        %1832 = vmatpush.bf16.msra.mxu0 %v1478
        %1833 = vmatpush.bf16.msra.mxu0 %v1477
        %1834 = vmatpush.bf16.msra.mxu0 %v1476
        %1835 = vmatpush.bf16.msra.mxu0 %v1475
        %1836 = vmatpush.bf16.msra.mxu0 %v1474
        %1837 = vmatmul.bf16.gmra.mxu0 %v745
        %v1838 = vpop.f32.mrf.mxu0
        %v1839 = vadd.f32 %v1826, %v1838
        %v1840 = vpop.f32.mrf.mxu0
        %1841 = vdwg.mxu0
        %1842 = vmatpush.bf16.msra.mxu0 %v1489
        %1843 = vmatpush.bf16.msra.mxu0 %v1488
        %1844 = vmatpush.bf16.msra.mxu0 %v1487
        %1845 = vmatpush.bf16.msra.mxu0 %v1486
        %1846 = vmatpush.bf16.msra.mxu0 %v1485
        %1847 = vmatpush.bf16.msra.mxu0 %v1484
        %1848 = vmatpush.bf16.msra.mxu0 %v1483
        %1849 = vmatpush.bf16.msra.mxu0 %v1482
        %1850 = vmatmul.bf16.gmra.mxu0 %v746
        %v1851 = vpop.f32.mrf.mxu0
        %v1852 = vadd.f32 %v1839, %v1851
        %v1853 = vpop.f32.mrf.mxu0
        %1854 = vdwg.mxu0
        %1855 = vmatpush.bf16.msra.mxu0 %v1497
        %1856 = vmatpush.bf16.msra.mxu0 %v1496
        %1857 = vmatpush.bf16.msra.mxu0 %v1495
        %1858 = vmatpush.bf16.msra.mxu0 %v1494
        %1859 = vmatpush.bf16.msra.mxu0 %v1493
        %1860 = vmatpush.bf16.msra.mxu0 %v1492
        %1861 = vmatpush.bf16.msra.mxu0 %v1491
        %1862 = vmatpush.bf16.msra.mxu0 %v1490
        %1863 = vmatmul.bf16.gmra.mxu0 %v747
        %v1864 = vpop.f32.mrf.mxu0
        %v1865 = vadd.f32 %v1852, %v1864
        %v1866 = vpop.f32.mrf.mxu0
        %1867 = vdwg.mxu0
        %1868 = vmatpush.bf16.msra.mxu0 %v1505
        %1869 = vmatpush.bf16.msra.mxu0 %v1504
        %1870 = vmatpush.bf16.msra.mxu0 %v1503
        %1871 = vmatpush.bf16.msra.mxu0 %v1502
        %1872 = vmatpush.bf16.msra.mxu0 %v1501
        %1873 = vmatpush.bf16.msra.mxu0 %v1500
        %1874 = vmatpush.bf16.msra.mxu0 %v1499
        %1875 = vmatpush.bf16.msra.mxu0 %v1498
        %1876 = vmatmul.bf16.gmra.mxu0 %v748
        %v1877 = vpop.f32.mrf.mxu0
        %v1878 = vadd.f32 %v1865, %v1877
        %v1879 = vpop.f32.mrf.mxu0
        %1880 = vdwg.mxu0
        %1881 = vmatpush.bf16.msra.mxu0 %v1513
        %1882 = vmatpush.bf16.msra.mxu0 %v1512
        %1883 = vmatpush.bf16.msra.mxu0 %v1511
        %1884 = vmatpush.bf16.msra.mxu0 %v1510
        %1885 = vmatpush.bf16.msra.mxu0 %v1509
        %1886 = vmatpush.bf16.msra.mxu0 %v1508
        %1887 = vmatpush.bf16.msra.mxu0 %v1507
        %1888 = vmatpush.bf16.msra.mxu0 %v1506
        %1889 = vmatmul.bf16.gmra.mxu0 %v749
        %v1890 = vpop.f32.mrf.mxu0
        %v1891 = vadd.f32 %v1878, %v1890
        %v1892 = vpop.f32.mrf.mxu0
        %1893 = vdwg.mxu0
        %1894 = vmatpush.bf16.msra.mxu0 %v1521
        %1895 = vmatpush.bf16.msra.mxu0 %v1520
        %1896 = vmatpush.bf16.msra.mxu0 %v1519
        %1897 = vmatpush.bf16.msra.mxu0 %v1518
        %1898 = vmatpush.bf16.msra.mxu0 %v1517
        %1899 = vmatpush.bf16.msra.mxu0 %v1516
        %1900 = vmatpush.bf16.msra.mxu0 %v1515
        %1901 = vmatpush.bf16.msra.mxu0 %v1514
        %1902 = vmatmul.bf16.gmra.mxu0 %v750
        %v1903 = vpop.f32.mrf.mxu0
        %v1904 = vadd.f32 %v1891, %v1903
        %v1905 = vpop.f32.mrf.mxu0
        %1906 = vdwg.mxu0
        %1907 = vmatpush.bf16.msra.mxu0 %v1529
        %1908 = vmatpush.bf16.msra.mxu0 %v1528
        %1909 = vmatpush.bf16.msra.mxu0 %v1527
        %1910 = vmatpush.bf16.msra.mxu0 %v1526
        %1911 = vmatpush.bf16.msra.mxu0 %v1525
        %1912 = vmatpush.bf16.msra.mxu0 %v1524
        %1913 = vmatpush.bf16.msra.mxu0 %v1523
        %1914 = vmatpush.bf16.msra.mxu0 %v1522
        %1915 = vmatmul.bf16.gmra.mxu0 %v751
        %v1916 = vpop.f32.mrf.mxu0
        %v1917 = vadd.f32 %v1904, %v1916
        %v1918 = vpop.f32.mrf.mxu0
        %1919 = vdwg.mxu0
        %1920 = vmatpush.bf16.msra.mxu0 %v1537
        %1921 = vmatpush.bf16.msra.mxu0 %v1536
        %1922 = vmatpush.bf16.msra.mxu0 %v1535
        %1923 = vmatpush.bf16.msra.mxu0 %v1534
        %1924 = vmatpush.bf16.msra.mxu0 %v1533
        %1925 = vmatpush.bf16.msra.mxu0 %v1532
        %1926 = vmatpush.bf16.msra.mxu0 %v1531
        %1927 = vmatpush.bf16.msra.mxu0 %v1530
        %1928 = vmatmul.bf16.gmra.mxu0 %v752
        %v1929 = vpop.f32.mrf.mxu0
        %v1930 = vadd.f32 %v1917, %v1929
        %v1931 = vpop.f32.mrf.mxu0
        %1932 = vdwg.mxu0
        %1933 = vmatpush.bf16.msra.mxu0 %v1545
        %1934 = vmatpush.bf16.msra.mxu0 %v1544
        %1935 = vmatpush.bf16.msra.mxu0 %v1543
        %1936 = vmatpush.bf16.msra.mxu0 %v1542
        %1937 = vmatpush.bf16.msra.mxu0 %v1541
        %1938 = vmatpush.bf16.msra.mxu0 %v1540
        %1939 = vmatpush.bf16.msra.mxu0 %v1539
        %1940 = vmatpush.bf16.msra.mxu0 %v1538
        %1941 = vmatmul.bf16.gmra.mxu0 %v753
        %v1942 = vpop.f32.mrf.mxu0
        %v1943 = vadd.f32 %v1930, %v1942
        %v1944 = vpop.f32.mrf.mxu0
        %1945 = vdwg.mxu0
        %1946 = vmatpush.bf16.msra.mxu0 %v1553
        %1947 = vmatpush.bf16.msra.mxu0 %v1552
        %1948 = vmatpush.bf16.msra.mxu0 %v1551
        %1949 = vmatpush.bf16.msra.mxu0 %v1550
        %1950 = vmatpush.bf16.msra.mxu0 %v1549
        %1951 = vmatpush.bf16.msra.mxu0 %v1548
        %1952 = vmatpush.bf16.msra.mxu0 %v1547
        %1953 = vmatpush.bf16.msra.mxu0 %v1546
        %1954 = vmatmul.bf16.gmra.mxu0 %v754
        %v1955 = vpop.f32.mrf.mxu0
        %v1956 = vadd.f32 %v1943, %v1955
        %v1957 = vpop.f32.mrf.mxu0
        %1958 = vdwg.mxu0
        %1959 = vmatpush.bf16.msra.mxu0 %v1561
        %1960 = vmatpush.bf16.msra.mxu0 %v1560
        %1961 = vmatpush.bf16.msra.mxu0 %v1559
        %1962 = vmatpush.bf16.msra.mxu0 %v1558
        %1963 = vmatpush.bf16.msra.mxu0 %v1557
        %1964 = vmatpush.bf16.msra.mxu0 %v1556
        %1965 = vmatpush.bf16.msra.mxu0 %v1555
        %1966 = vmatpush.bf16.msra.mxu0 %v1554
        %1967 = vmatmul.bf16.gmra.mxu0 %v755
        %v1968 = vpop.f32.mrf.mxu0
        %v1969 = vadd.f32 %v1956, %v1968
        %v1970 = vpop.f32.mrf.mxu0
        %1971 = vdwg.mxu0
        %1972 = vmatpush.bf16.msra.mxu0 %v1569
        %1973 = vmatpush.bf16.msra.mxu0 %v1568
        %1974 = vmatpush.bf16.msra.mxu0 %v1567
        %1975 = vmatpush.bf16.msra.mxu0 %v1566
        %1976 = vmatpush.bf16.msra.mxu0 %v1565
        %1977 = vmatpush.bf16.msra.mxu0 %v1564
        %1978 = vmatpush.bf16.msra.mxu0 %v1563
        %1979 = vmatpush.bf16.msra.mxu0 %v1562
        %1980 = vmatmul.bf16.gmra.mxu0 %v756
        %v1981 = vpop.f32.mrf.mxu0
        %v1982 = vadd.f32 %v1969, %v1981
        %v1983 = vpop.f32.mrf.mxu0
        %1984 = vdwg.mxu0
        %1985 = vmatpush.bf16.msra.mxu0 %v1577
        %1986 = vmatpush.bf16.msra.mxu0 %v1576
        %1987 = vmatpush.bf16.msra.mxu0 %v1575
        %1988 = vmatpush.bf16.msra.mxu0 %v1574
        %1989 = vmatpush.bf16.msra.mxu0 %v1573
        %1990 = vmatpush.bf16.msra.mxu0 %v1572
        %1991 = vmatpush.bf16.msra.mxu0 %v1571
        %1992 = vmatpush.bf16.msra.mxu0 %v1570
        %1993 = vmatmul.bf16.gmra.mxu0 %v757
        %v1994 = vpop.f32.mrf.mxu0
        %v1995 = vadd.f32 %v1982, %v1994
        %v1996 = vpop.f32.mrf.mxu0
        %1997 = vdwg.mxu0
        %v1998 = vadd.f32 %v377, %v1995
        %1999 = vst [vmem:[#allocation2] sm:$0xff] %v1998
        %p2000 = scmp.eq.s32.totalorder %s28, 1
        // Predicated region
        $region61: #{classifier_forward.1} parent=39 // pred_check
          %p2001 = pneg %p2000
        $region62: #{classifier_forward.1} parent=39 // pred_check_branch
          %2003 = sbr.rel (%p2001) target = $region64
        $region63: #{classifier_forward.1} parent=39 // pred_region
          %v2004 = vld [vmem:[#allocation2] sm:$0xff]
          %v2005 = vmax.f32 %v2004, 0.0
          %v2006 = vpack.c.bf16 %v2005, %v2005
          %v2007 = vld [vmem:[#allocation7] sm:$0xf]
          %v2008 = vld [vmem:[#allocation7 + $0x4] sm:$0xf]
          %v2009 = vld [vmem:[#allocation7 + $0x8] sm:$0xf]
          %v2010 = vld [vmem:[#allocation7 + $0xc] sm:$0xf]
          %v2011 = vld [vmem:[#allocation7 + $0x10] sm:$0xf]
          %v2012 = vld [vmem:[#allocation7 + $0x14] sm:$0xf]
          %v2013 = vld [vmem:[#allocation7 + $0x18] sm:$0xf]
          %v2014 = vld [vmem:[#allocation7 + $0x1c] sm:$0xf]
          %v2015 = vld [vmem:[#allocation7 + $0x20] sm:$0xf]
          %v2016 = vld [vmem:[#allocation7 + $0x24] sm:$0xf]
          %v2017 = vld [vmem:[#allocation7 + $0x28] sm:$0xf]
          %v2018 = vld [vmem:[#allocation7 + $0x2c] sm:$0xf]
          %v2019 = vld [vmem:[#allocation7 + $0x30] sm:$0xf]
          %v2020 = vld [vmem:[#allocation7 + $0x34] sm:$0xf]
          %v2021 = vld [vmem:[#allocation7 + $0x38] sm:$0xf]
          %v2022 = vld [vmem:[#allocation7 + $0x3c] sm:$0xf]
          %v2023 = vld [vmem:[#allocation8] sm:$0x1]
          %v2025 = vperm.slane %v2023, 0
          %v2043 = vunpack.c.l.b16 %v2007
          %v2044 = vunpack.c.l.b16 %v2008
          %v2045 = vunpack.c.l.b16 %v2009
          %v2046 = vunpack.c.l.b16 %v2010
          %v2047 = vunpack.c.l.b16 %v2011
          %v2048 = vunpack.c.l.b16 %v2012
          %v2049 = vunpack.c.l.b16 %v2013
          %v2050 = vunpack.c.l.b16 %v2014
          %v2051 = vunpack.c.l.b16 %v2015
          %v2052 = vunpack.c.l.b16 %v2016
          %v2053 = vunpack.c.l.b16 %v2017
          %v2054 = vunpack.c.l.b16 %v2018
          %v2055 = vunpack.c.l.b16 %v2019
          %v2056 = vunpack.c.l.b16 %v2020
          %v2057 = vunpack.c.l.b16 %v2021
          %v2058 = vunpack.c.l.b16 %v2022
          %v2059 = vpack.c.b16 %v2044, %v2043
          %v2060 = vpack.c.b16 %v2046, %v2045
          %v2061 = vpack.c.b16 %v2048, %v2047
          %v2062 = vpack.c.b16 %v2050, %v2049
          %v2063 = vpack.c.b16 %v2052, %v2051
          %v2064 = vpack.c.b16 %v2054, %v2053
          %v2065 = vpack.c.b16 %v2056, %v2055
          %v2066 = vpack.c.b16 %v2058, %v2057
          %2075 = vmatpush.bf16.msra.mxu0 %v2066
          %2076 = vmatpush.bf16.msra.mxu0 %v2065
          %2077 = vmatpush.bf16.msra.mxu0 %v2064
          %2078 = vmatpush.bf16.msra.mxu0 %v2063
          %2079 = vmatpush.bf16.msra.mxu0 %v2062
          %2080 = vmatpush.bf16.msra.mxu0 %v2061
          %2081 = vmatpush.bf16.msra.mxu0 %v2060
          %2082 = vmatpush.bf16.msra.mxu0 %v2059
          %2083 = vmatmul.bf16.gmra.mxu0 %v2006
          %v2084 = vpop.f32.mrf.mxu0
          %v2085 = vadd.f32 %v2025, %v2084
          %v2086 = vpop.f32.mrf.mxu0
          %2087 = vdwg.mxu0
          %2088 = vst [vmem:[%s367] sm:$0xff] %v2085
        $region64: #{classifier_forward.1} parent=39 // pred_fallthru
          _
        %p2089 = scmp.lt.s32.totalorder %s26, 0
        %s2090 = scalar_select %p2089, %s26, 0
        %p2091 = scmp.lt.s32.totalorder %s27, 0
        %s2092 = scalar_select %p2091, %s27, 0
        %s2093 = sadd.s32 %s2092, %s2090
        %s2094 = smul.addr %s2093, 8
        %s2095 = scalar_lea.vmem %s5, %s2094
        // Predicated region
        $region65: #{classifier_forward.1} parent=39 // pred_check
          %p2096 = pneg %p187
        $region66: #{classifier_forward.1} parent=39 // pred_check_branch
          %2098 = sbr.rel (%p2096) target = $region68
        $region67: #{classifier_forward.1} parent=39 // pred_region
          _
        $region68: #{classifier_forward.1} parent=39 // pred_fallthru
          _
        // Predicated region
        $region69: #{classifier_forward.1} parent=39 // pred_check
          %p2099 = pneg %p187
        $region70: #{classifier_forward.1} parent=39 // pred_check_branch
          %2101 = sbr.rel (%p2099) target = $region72
        $region71: #{classifier_forward.1} parent=39 // pred_region
          %p2102 = scmp.lt.s32.totalorder %s26, 0
          %s2103 = scalar_select %p2102, %s26, 0
          %p2104 = scmp.lt.s32.totalorder %s27, 0
          %s2105 = scalar_select %p2104, %s27, 0
          %s2106 = sadd.s32 %s2105, %s2103
          %s2107 = smul.addr %s2106, 8
          %s2108 = scalar_lea.vmem %s5, %s2107
        $region72: #{classifier_forward.1} parent=39 // pred_fallthru
          _
      $region40: #{classifier_forward.1} parent=5 // pred_fallthru
        _
      %p2109 = scmp.le.s32.totalorder 2, %s16
      // Predicated region
      $region73: #{classifier_forward.1} parent=5 // pred_check
        %p2110 = pneg %p2109
      $region74: #{classifier_forward.1} parent=5 // pred_check_branch
        %2112 = sbr.rel (%p2110) target = $region76
      $region75: #{classifier_forward.1} parent=5 // pred_region
        %s2113 = ssub.s32 %s16, 2
      $region76: #{classifier_forward.1} parent=5 // pred_fallthru
        _
    $region6: #{classifier_forward.1} parent=1 // loop_footer
      %s20 = sadd.s32 1, %s16
    $region7: #{classifier_forward.1} parent=1 // loop_footer_branch
      %15 = sbr.rel target = $region3
    $region8: #{classifier_forward.1} parent=1 // loop_exit
      _
    %2114 = vsyncpa [#allocation4], 1
    %s2115 = scalar_lea.sflag [#allocation4], 1
    %2116 = vsyncpa %s2115, 1
    %2117 = vsyncpa [#allocation6], 1
    %2118 = vsyncpa [#allocation9], 1

</llo_original>
